<compile_context>
chip_gen: v6e
topology: v6e:2x2x1
jax: 0.10.0
libtpu: 0.0.40
codegen_flags: <defaults>
</compile_context>

<pallas_src>
import functools

import numpy as np
import jax
import jax.numpy as jnp
from jax import lax
from jax.experimental import pallas as pl
from jax.experimental.pallas import tpu as pltpu


# ------------------------------- fused kernel -------------------------------
def _last2d_kernel(x_ref, w1a_ref, w1b_ref, w1c_ref, b1_ref,
                   w2a_ref, w2b_ref, w2c_ref, b2_ref,
                   w3_ref, b3_ref, gsum_ref, gmax_ref,
                   o_ref, h1p_ref, *, Sh, Cout, use_group_max):
    f32 = jnp.float32

    # ---- conv1 (3x3, pad 1) + folded BN + ReLU -----------------------------
    # Three accumulating banded matmuls over super-rows: no im2col, no concat.
    h1 = jnp.dot(x_ref[pl.ds(0, Sh), :], w1a_ref[...], preferred_element_type=f32)
    h1 += jnp.dot(x_ref[pl.ds(1, Sh), :], w1b_ref[...], preferred_element_type=f32)
    h1 += jnp.dot(x_ref[pl.ds(2, Sh), :], w1c_ref[...], preferred_element_type=f32)
    h1 = jnp.maximum(h1 + b1_ref[...], 0.0)                  # (Sh, R*W*Cmid) f32

    # ---- conv2 row halo via pre-zeroed VMEM scratch (no lane concat) -------
    Lmid = h1p_ref.shape[1]
    zrow = jnp.zeros((1, Lmid), f32)
    h1p_ref[pl.ds(0, 1), :] = zrow                            # top zero padding
    h1p_ref[pl.ds(Sh + 1, 1), :] = zrow                       # bottom zero padding
    h1p_ref[pl.ds(1, Sh), :] = h1                             # interior store

    # ---- conv2 (3x3, pad 1) + folded BN + ReLU -----------------------------
    h2 = jnp.dot(h1p_ref[pl.ds(0, Sh), :].astype(jnp.bfloat16), w2a_ref[...],
                 preferred_element_type=f32)
    h2 += jnp.dot(h1p_ref[pl.ds(1, Sh), :].astype(jnp.bfloat16), w2b_ref[...],
                  preferred_element_type=f32)
    h2 += jnp.dot(h1p_ref[pl.ds(2, Sh), :].astype(jnp.bfloat16), w2c_ref[...],
                  preferred_element_type=f32)
    h2 = jnp.maximum(h2 + b2_ref[...], 0.0).astype(jnp.bfloat16)

    # ---- conv3 (1x1) as block-diagonal matmul + bias -----------------------
    logits = jnp.dot(h2, w3_ref[...], preferred_element_type=f32) + b3_ref[...]

    # ---- softmax over the Cout-wide channel groups along the lane dim ------
    if use_group_max:
        # Exact per-pixel max: after rolls, lane g*Cout + Cout-1 holds the max
        # of group g; the 0/1 matrix gmax broadcasts it back to every lane.
        m = logits
        shift = 1
        while shift < Cout:
            m = jnp.maximum(m, pltpu.roll(m, shift=shift, axis=1))
            shift *= 2
        mg = jnp.dot(m, gmax_ref[...], preferred_element_type=f32)
    else:
        # Per-row max is a per-group-constant shift -> still an exact softmax.
        mg = jnp.max(logits, axis=-1, keepdims=True)
    e = jnp.exp(logits - mg)
    denom = jnp.dot(e, gsum_ref[...], preferred_element_type=f32)  # group sums
    o_ref[...] = e * pl.reciprocal(denom, approx=False)      # lane-dense store


# ------------------------- host-side parameter folding -----------------------
def _fold_conv_bn(w, cb, gamma, beta, mean, var, eps=1e-5):
    """Fold BN(eval) into conv: returns folded (Cout,Cin,3,3) weight + (Cout,) bias."""
    scale = gamma / np.sqrt(var + eps)
    w_f = w * scale[:, None, None, None]
    b_f = beta + scale * (cb - mean)
    return w_f, b_f


def _banded_3x3(w, R, W):
    """3x3 conv (pad=1) over an image whose rows are packed R-per-super-row.

    Returns three (R*W*Cin, R*W*Cout) band matrices for super-row offsets
    d = -1, 0, +1.  W-direction zero padding is encoded by omission.
    """
    Co, Ci, _, _ = w.shape
    Li, Lo = R * W * Ci, R * W * Co
    mats = [np.zeros((Li, Lo), np.float32) for _ in range(3)]   # d = -1, 0, +1
    for ky in range(3):
        for r_out in range(R):
            rr = r_out + ky - 1
            d = -1 if rr < 0 else (1 if rr >= R else 0)
            r_in = rr - d * R
            for kx in range(3):
                tap = w[:, :, ky, kx].T                          # (Ci, Co)
                for w_out in range(W):
                    w_in = w_out + kx - 1
                    if w_in < 0 or w_in >= W:
                        continue                                 # W zero padding
                    i0 = (r_in * W + w_in) * Ci
                    o0 = (r_out * W + w_out) * Co
                    mats[d + 1][i0:i0 + Ci, o0:o0 + Co] += tap
    return mats


def _blockdiag_1x1(w, R, W):
    """1x1 conv as a block-diagonal (R*W*Cin, R*W*Cout) matrix."""
    Co, Ci = w.shape[0], w.shape[1]
    m = np.zeros((R * W * Ci, R * W * Co), np.float32)
    w2 = w[:, :, 0, 0].T                                         # (Ci, Co)
    for p in range(R * W):
        m[p * Ci:(p + 1) * Ci, p * Co:(p + 1) * Co] = w2
    return m


def _group_mats(R, W, Co):
    """0/1 matrices for the channel-group softmax (group sum / max broadcast)."""
    L = R * W * Co
    gsum = np.zeros((L, L), np.float32)
    gmax = np.zeros((L, L), np.float32)
    for p in range(R * W):
        gsum[p * Co:(p + 1) * Co, p * Co:(p + 1) * Co] = 1.0
        gmax[p * Co + Co - 1, p * Co:(p + 1) * Co] = 1.0
    return gsum, gmax


def _tile_bias(b, R, W):
    return np.tile(np.asarray(b, np.float32), R * W)[None, :]   # (1, R*W*C)


def _pick_superrow_pack(H, W, Cin, Cmid, Cout, max_lanes=512):
    """Smallest R | H making the matmul lane widths >=128 without exceeding max_lanes."""
    best = 1
    for R in range(1, H + 1):
        if H % R:
            continue
        if R * W * max(Cin, Cmid, Cout) > max_lanes:
            break
        best = R
        if R * W * min(Cin, Cout) >= 128:
            break
    return best


def prepare_last2d(params, H, W, R):
    """One-time (inference) fold: BN into conv, convs into banded bf16 matrices."""
    p = {k: np.asarray(v, np.float32) for k, v in params.items()}
    w1f, b1f = _fold_conv_bn(p["w1"], p["cb1"], p["g1"], p["be1"], p["m1"], p["v1"])
    w2f, b2f = _fold_conv_bn(p["w2"], p["cb2"], p["g2"], p["be2"], p["m2"], p["v2"])
    w1m = [jnp.asarray(m, jnp.bfloat16) for m in _banded_3x3(w1f, R, W)]
    w2m = [jnp.asarray(m, jnp.bfloat16) for m in _banded_3x3(w2f, R, W)]
    w3m = jnp.asarray(_blockdiag_1x1(p["w3"], R, W), jnp.bfloat16)
    Cout = p["w3"].shape[0]
    gsum, gmax = _group_mats(R, W, Cout)
    return dict(
        w1a=w1m[0], w1b=w1m[1], w1c=w1m[2], b1=jnp.asarray(_tile_bias(b1f, R, W)),
        w2a=w2m[0], w2b=w2m[1], w2c=w2m[2], b2=jnp.asarray(_tile_bias(b2f, R, W)),
        w3=w3m, b3=jnp.asarray(_tile_bias(p["cb3"], R, W)),
        gsum=jnp.asarray(gsum, jnp.float32), gmax=jnp.asarray(gmax, jnp.float32))


# ------------------------------- forward pass --------------------------------
@functools.partial(jax.jit, static_argnames=("R",))
def last2d_forward(x_nchw, folded, *, R):
    N, Cin, H, W = x_nchw.shape
    Sh = H // R
    Lin = R * W * Cin
    Lmid = folded["b1"].shape[1]
    Lout = folded["b3"].shape[1]
    Cout = Lout // (R * W)
    use_group_max = (Cout & (Cout - 1)) == 0   # exact group max needs pow-2 Cout

    # NCHW -> NHWC in bf16 FIRST, then pack R rows per super-row and add one
    # zero super-row of halo on top and bottom (conv1's H padding).
    x = jnp.transpose(x_nchw.astype(jnp.bfloat16), (0, 2, 3, 1))
    xp = jnp.pad(x.reshape(N, Sh, Lin), ((0, 0), (1, 1), (0, 0)))

    kernel = functools.partial(_last2d_kernel, Sh=Sh, Cout=Cout,
                               use_group_max=use_group_max)
    const = lambda n: (0, 0)

    out = pl.pallas_call(
        kernel,
        out_shape=jax.ShapeDtypeStruct((N, Sh, Lout), jnp.float32),
        grid=(N,),
        in_specs=[
            pl.BlockSpec((None, Sh + 2, Lin), lambda n: (n, 0, 0)),   # x (per image)
            pl.BlockSpec((Lin, Lmid), const),                         # conv1 band d=-1
            pl.BlockSpec((Lin, Lmid), const),                         # conv1 band d=0
            pl.BlockSpec((Lin, Lmid), const),                         # conv1 band d=+1
            pl.BlockSpec((1, Lmid), const),                           # b1 (tiled)
            pl.BlockSpec((Lmid, Lmid), const),                        # conv2 band d=-1
            pl.BlockSpec((Lmid, Lmid), const),                        # conv2 band d=0
            pl.BlockSpec((Lmid, Lmid), const),                        # conv2 band d=+1
            pl.BlockSpec((1, Lmid), const),                           # b2 (tiled)
            pl.BlockSpec((Lmid, Lout), const),                        # conv3 block-diag
            pl.BlockSpec((1, Lout), const),                           # b3 (tiled)
            pl.BlockSpec((Lout, Lout), const),                        # softmax group-sum
            pl.BlockSpec((Lout, Lout), const),                        # softmax max-bcast
        ],
        out_specs=pl.BlockSpec((None, Sh, Lout), lambda n: (n, 0, 0)),
        scratch_shapes=[pltpu.VMEM((Sh + 2, Lmid), jnp.float32)],     # conv2 row halo
        compiler_params=pltpu.CompilerParams(
            dimension_semantics=("parallel",),
            vmem_limit_bytes=32 * 1024 * 1024),
    )(xp, folded["w1a"], folded["w1b"], folded["w1c"], folded["b1"],
      folded["w2a"], folded["w2b"], folded["w2c"], folded["b2"],
      folded["w3"], folded["b3"], folded["gsum"], folded["gmax"])

    # Un-pack super-rows and return NCHW.
    y = out.reshape(N, Sh, R, W, Cout)
    return jnp.transpose(y, (0, 4, 1, 2, 3)).reshape(N, Cout, H, W)


# --------------------------- parameter construction --------------------------
def init_last2d_params(key, in_ch, mid_ch, out_ch):
    ks = jax.random.split(key, 14)
    p = {}
    p["w1"] = 0.2 * jax.random.normal(ks[0], (mid_ch, in_ch, 3, 3), jnp.float32)
    p["cb1"] = 0.1 * jax.random.normal(ks[1], (mid_ch,), jnp.float32)
    p["g1"] = 1.0 + 0.1 * jax.random.normal(ks[2], (mid_ch,), jnp.float32)
    p["be1"] = 0.1 * jax.random.normal(ks[3], (mid_ch,), jnp.float32)
    p["m1"] = 0.1 * jax.random.normal(ks[4], (mid_ch,), jnp.float32)
    p["v1"] = jnp.abs(jax.random.normal(ks[5], (mid_ch,), jnp.float32)) + 0.5
    p["w2"] = 0.2 * jax.random.normal(ks[6], (mid_ch, mid_ch, 3, 3), jnp.float32)
    p["cb2"] = 0.1 * jax.random.normal(ks[7], (mid_ch,), jnp.float32)
    p["g2"] = 1.0 + 0.1 * jax.random.normal(ks[8], (mid_ch,), jnp.float32)
    p["be2"] = 0.1 * jax.random.normal(ks[9], (mid_ch,), jnp.float32)
    p["m2"] = 0.1 * jax.random.normal(ks[10], (mid_ch,), jnp.float32)
    p["v2"] = jnp.abs(jax.random.normal(ks[11], (mid_ch,), jnp.float32)) + 0.5
    p["w3"] = 0.5 * jax.random.normal(ks[12], (out_ch, mid_ch, 1, 1), jnp.float32)
    p["cb3"] = 0.1 * jax.random.normal(ks[13], (out_ch,), jnp.float32)
    return p


# --------------------------- pure-JAX reference check -------------------------
def _ref_forward(x, p, eps=1e-5):
    def conv(x, w, b, pad):
        y = lax.conv_general_dilated(
            x, w, window_strides=(1, 1), padding=((pad, pad), (pad, pad)),
            dimension_numbers=("NCHW", "OIHW", "NCHW"))
        return y + b[None, :, None, None]

    def bn(y, g, be, m, v):
        inv = g / jnp.sqrt(v + eps)
        return (y - m[None, :, None, None]) * inv[None, :, None, None] \
            + be[None, :, None, None]

    h = jnp.maximum(bn(conv(x, p["w1"], p["cb1"], 1),
                       p["g1"], p["be1"], p["m1"], p["v1"]), 0.0)
    h = jnp.maximum(bn(conv(h, p["w2"], p["cb2"], 1),
                       p["g2"], p["be2"], p["m2"], p["v2"]), 0.0)
    logits = conv(h, p["w3"], p["cb3"], 0)
    return jax.nn.softmax(logits, axis=1)


if __name__ == "__main__":
    key = jax.random.PRNGKey(0)
    k_x, k_p = jax.random.split(key)

    N, in_ch, mid_ch, out_ch = 2, 4, 8, 4
    H = W = 16

    x = jax.random.normal(k_x, (N, in_ch, H, W), jnp.float32)
    params = init_last2d_params(k_p, in_ch, mid_ch, out_ch)

    R = _pick_superrow_pack(H, W, in_ch, mid_ch, out_ch)     # -> 2 at these shapes
    folded = prepare_last2d(params, H, W, R)

    out = last2d_forward(x, folded, R=R)
    out = jax.block_until_ready(out)

    ref = _ref_forward(x, params)
    assert out.shape == (N, out_ch, H, W), out.shape
    # bf16 MXU operands across three chained matmuls -> loosened tolerance
    assert jnp.allclose(out, ref, atol=3e-2, rtol=3e-2), \
        float(jnp.max(jnp.abs(out - ref)))

    print("KERNEL_OK")
</pallas_src>

<mosaic_0001>
module attributes {stable_mosaic.version = 11 : i64} {
  func.func @_last2d_kernel(%arg0: i32, %arg1: memref<1x10x128xbf16, #tpu.memory_space<vmem>>, %arg2: memref<128x256xbf16, #tpu.memory_space<vmem>>, %arg3: memref<128x256xbf16, #tpu.memory_space<vmem>>, %arg4: memref<128x256xbf16, #tpu.memory_space<vmem>>, %arg5: memref<1x256xf32, #tpu.memory_space<vmem>>, %arg6: memref<256x256xbf16, #tpu.memory_space<vmem>>, %arg7: memref<256x256xbf16, #tpu.memory_space<vmem>>, %arg8: memref<256x256xbf16, #tpu.memory_space<vmem>>, %arg9: memref<1x256xf32, #tpu.memory_space<vmem>>, %arg10: memref<256x128xbf16, #tpu.memory_space<vmem>>, %arg11: memref<1x128xf32, #tpu.memory_space<vmem>>, %arg12: memref<128x128xf32, #tpu.memory_space<vmem>>, %arg13: memref<128x128xf32, #tpu.memory_space<vmem>>, %arg14: memref<1x8x128xf32, #tpu.memory_space<vmem>>, %arg15: memref<10x256xf32, #tpu.memory_space<vmem>>) attributes {dimension_semantics = [#tpu.dimension_semantics<parallel>], iteration_bounds = array<i64: 2>, scalar_prefetch = 0 : i64, scratch_operands = 1 : i64, tpu.core_type = #tpu.core_type<tc>, window_params = [{transform_indices = @transform_0, window_bounds = array<i64: 1, 10, 128>}, {pipeline_mode = #tpu.pipeline_mode<synchronous>, transform_indices = @transform_1, window_bounds = array<i64: 128, 256>}, {pipeline_mode = #tpu.pipeline_mode<synchronous>, transform_indices = @transform_2, window_bounds = array<i64: 128, 256>}, {pipeline_mode = #tpu.pipeline_mode<synchronous>, transform_indices = @transform_3, window_bounds = array<i64: 128, 256>}, {pipeline_mode = #tpu.pipeline_mode<synchronous>, transform_indices = @transform_4, window_bounds = array<i64: 1, 256>}, {pipeline_mode = #tpu.pipeline_mode<synchronous>, transform_indices = @transform_5, window_bounds = array<i64: 256, 256>}, {pipeline_mode = #tpu.pipeline_mode<synchronous>, transform_indices = @transform_6, window_bounds = array<i64: 256, 256>}, {pipeline_mode = #tpu.pipeline_mode<synchronous>, transform_indices = @transform_7, window_bounds = array<i64: 256, 256>}, {pipeline_mode = #tpu.pipeline_mode<synchronous>, transform_indices = @transform_8, window_bounds = array<i64: 1, 256>}, {pipeline_mode = #tpu.pipeline_mode<synchronous>, transform_indices = @transform_9, window_bounds = array<i64: 256, 128>}, {pipeline_mode = #tpu.pipeline_mode<synchronous>, transform_indices = @transform_10, window_bounds = array<i64: 1, 128>}, {pipeline_mode = #tpu.pipeline_mode<synchronous>, transform_indices = @transform_11, window_bounds = array<i64: 128, 128>}, {pipeline_mode = #tpu.pipeline_mode<synchronous>, transform_indices = @transform_12, window_bounds = array<i64: 128, 128>}, {transform_indices = @transform_13, window_bounds = array<i64: 1, 8, 128>}]} {
    %c0 = arith.constant 0 : index
    %c0_0 = arith.constant 0 : index
    %c0_1 = arith.constant 0 : index
    %0 = vector.load %arg1[%c0, %c0_0, %c0_1] : memref<1x10x128xbf16, #tpu.memory_space<vmem>>, vector<1x8x128xbf16>
    %1 = vector.shape_cast %0 : vector<1x8x128xbf16> to vector<8x128xbf16>
    %c0_2 = arith.constant 0 : index
    %c0_3 = arith.constant 0 : index
    %2 = vector.load %arg2[%c0_2, %c0_3] : memref<128x256xbf16, #tpu.memory_space<vmem>>, vector<128x256xbf16>
    %cst = arith.constant dense<0.000000e+00> : vector<8x256xf32>
    %3 = tpu.matmul %1, %2, %cst {dimension_numbers = #tpu.dot_dimension_numbers<[1], [0], [0], [1], [0, 0, 1, 1], [], []>} : vector<8x128xbf16>, vector<128x256xbf16>, vector<8x256xf32> -> vector<8x256xf32>
    %c0_4 = arith.constant 0 : index
    %c1 = arith.constant 1 : index
    %c0_5 = arith.constant 0 : index
    %4 = vector.load %arg1[%c0_4, %c1, %c0_5] : memref<1x10x128xbf16, #tpu.memory_space<vmem>>, vector<1x8x128xbf16>
    %5 = vector.shape_cast %4 : vector<1x8x128xbf16> to vector<8x128xbf16>
    %c0_6 = arith.constant 0 : index
    %c0_7 = arith.constant 0 : index
    %6 = vector.load %arg3[%c0_6, %c0_7] : memref<128x256xbf16, #tpu.memory_space<vmem>>, vector<128x256xbf16>
    %cst_8 = arith.constant dense<0.000000e+00> : vector<8x256xf32>
    %7 = tpu.matmul %5, %6, %cst_8 {dimension_numbers = #tpu.dot_dimension_numbers<[1], [0], [0], [1], [0, 0, 1, 1], [], []>} : vector<8x128xbf16>, vector<128x256xbf16>, vector<8x256xf32> -> vector<8x256xf32>
    %8 = arith.addf %3, %7 : vector<8x256xf32>
    %c0_9 = arith.constant 0 : index
    %c2 = arith.constant 2 : index
    %c0_10 = arith.constant 0 : index
    %9 = vector.load %arg1[%c0_9, %c2, %c0_10] : memref<1x10x128xbf16, #tpu.memory_space<vmem>>, vector<1x8x128xbf16>
    %10 = vector.shape_cast %9 : vector<1x8x128xbf16> to vector<8x128xbf16>
    %c0_11 = arith.constant 0 : index
    %c0_12 = arith.constant 0 : index
    %11 = vector.load %arg4[%c0_11, %c0_12] : memref<128x256xbf16, #tpu.memory_space<vmem>>, vector<128x256xbf16>
    %cst_13 = arith.constant dense<0.000000e+00> : vector<8x256xf32>
    %12 = tpu.matmul %10, %11, %cst_13 {dimension_numbers = #tpu.dot_dimension_numbers<[1], [0], [0], [1], [0, 0, 1, 1], [], []>} : vector<8x128xbf16>, vector<128x256xbf16>, vector<8x256xf32> -> vector<8x256xf32>
    %13 = arith.addf %8, %12 : vector<8x256xf32>
    %c0_14 = arith.constant 0 : index
    %c0_15 = arith.constant 0 : index
    %14 = vector.load %arg5[%c0_14, %c0_15] : memref<1x256xf32, #tpu.memory_space<vmem>>, vector<1x256xf32>
    %15 = vector.broadcast %14 : vector<1x256xf32> to vector<8x256xf32>
    %16 = arith.addf %13, %15 : vector<8x256xf32>
    %cst_16 = arith.constant 0.000000e+00 : f32
    %17 = vector.broadcast %cst_16 : f32 to vector<8x256xf32>
    %18 = arith.maximumf %16, %17 : vector<8x256xf32>
    %cst_17 = arith.constant 0.000000e+00 : f32
    %19 = vector.broadcast %cst_17 : f32 to vector<1x256xf32>
    %c0_18 = arith.constant 0 : index
    %c0_19 = arith.constant 0 : index
    %20 = vector.load %arg15[%c0_18, %c0_19] : memref<10x256xf32, #tpu.memory_space<vmem>>, vector<1x256xf32>
    tpu.vector_store %arg15[%c0_18, %c0_19], %19 {strides = array<i32>} : memref<10x256xf32, #tpu.memory_space<vmem>>, vector<1x256xf32>,
    %c9 = arith.constant 9 : index
    %c0_20 = arith.constant 0 : index
    %21 = vector.load %arg15[%c9, %c0_20] : memref<10x256xf32, #tpu.memory_space<vmem>>, vector<1x256xf32>
    tpu.vector_store %arg15[%c9, %c0_20], %19 {strides = array<i32>} : memref<10x256xf32, #tpu.memory_space<vmem>>, vector<1x256xf32>,
    %c1_21 = arith.constant 1 : index
    %c0_22 = arith.constant 0 : index
    %22 = vector.load %arg15[%c1_21, %c0_22] : memref<10x256xf32, #tpu.memory_space<vmem>>, vector<8x256xf32>
    tpu.vector_store %arg15[%c1_21, %c0_22], %18 {strides = array<i32>} : memref<10x256xf32, #tpu.memory_space<vmem>>, vector<8x256xf32>,
    %c0_23 = arith.constant 0 : index
    %c0_24 = arith.constant 0 : index
    %23 = vector.load %arg15[%c0_23, %c0_24] : memref<10x256xf32, #tpu.memory_space<vmem>>, vector<8x256xf32>
    %24 = arith.truncf %23 : vector<8x256xf32> to vector<8x256xbf16>
    %c0_25 = arith.constant 0 : index
    %c0_26 = arith.constant 0 : index
    %25 = vector.load %arg6[%c0_25, %c0_26] : memref<256x256xbf16, #tpu.memory_space<vmem>>, vector<256x256xbf16>
    %cst_27 = arith.constant dense<0.000000e+00> : vector<8x256xf32>
    %26 = tpu.matmul %24, %25, %cst_27 {dimension_numbers = #tpu.dot_dimension_numbers<[1], [0], [0], [1], [0, 0, 1, 1], [], []>} : vector<8x256xbf16>, vector<256x256xbf16>, vector<8x256xf32> -> vector<8x256xf32>
    %c1_28 = arith.constant 1 : index
    %c0_29 = arith.constant 0 : index
    %27 = vector.load %arg15[%c1_28, %c0_29] : memref<10x256xf32, #tpu.memory_space<vmem>>, vector<8x256xf32>
    %28 = arith.truncf %27 : vector<8x256xf32> to vector<8x256xbf16>
    %c0_30 = arith.constant 0 : index
    %c0_31 = arith.constant 0 : index
    %29 = vector.load %arg7[%c0_30, %c0_31] : memref<256x256xbf16, #tpu.memory_space<vmem>>, vector<256x256xbf16>
    %cst_32 = arith.constant dense<0.000000e+00> : vector<8x256xf32>
    %30 = tpu.matmul %28, %29, %cst_32 {dimension_numbers = #tpu.dot_dimension_numbers<[1], [0], [0], [1], [0, 0, 1, 1], [], []>} : vector<8x256xbf16>, vector<256x256xbf16>, vector<8x256xf32> -> vector<8x256xf32>
    %31 = arith.addf %26, %30 : vector<8x256xf32>
    %c2_33 = arith.constant 2 : index
    %c0_34 = arith.constant 0 : index
    %32 = vector.load %arg15[%c2_33, %c0_34] : memref<10x256xf32, #tpu.memory_space<vmem>>, vector<8x256xf32>
    %33 = arith.truncf %32 : vector<8x256xf32> to vector<8x256xbf16>
    %c0_35 = arith.constant 0 : index
    %c0_36 = arith.constant 0 : index
    %34 = vector.load %arg8[%c0_35, %c0_36] : memref<256x256xbf16, #tpu.memory_space<vmem>>, vector<256x256xbf16>
    %cst_37 = arith.constant dense<0.000000e+00> : vector<8x256xf32>
    %35 = tpu.matmul %33, %34, %cst_37 {dimension_numbers = #tpu.dot_dimension_numbers<[1], [0], [0], [1], [0, 0, 1, 1], [], []>} : vector<8x256xbf16>, vector<256x256xbf16>, vector<8x256xf32> -> vector<8x256xf32>
    %36 = arith.addf %31, %35 : vector<8x256xf32>
    %c0_38 = arith.constant 0 : index
    %c0_39 = arith.constant 0 : index
    %37 = vector.load %arg9[%c0_38, %c0_39] : memref<1x256xf32, #tpu.memory_space<vmem>>, vector<1x256xf32>
    %38 = vector.broadcast %37 : vector<1x256xf32> to vector<8x256xf32>
    %39 = arith.addf %36, %38 : vector<8x256xf32>
    %cst_40 = arith.constant 0.000000e+00 : f32
    %40 = vector.broadcast %cst_40 : f32 to vector<8x256xf32>
    %41 = arith.maximumf %39, %40 : vector<8x256xf32>
    %42 = arith.truncf %41 : vector<8x256xf32> to vector<8x256xbf16>
    %c0_41 = arith.constant 0 : index
    %c0_42 = arith.constant 0 : index
    %43 = vector.load %arg10[%c0_41, %c0_42] : memref<256x128xbf16, #tpu.memory_space<vmem>>, vector<256x128xbf16>
    %cst_43 = arith.constant dense<0.000000e+00> : vector<8x128xf32>
    %44 = tpu.matmul %42, %43, %cst_43 {dimension_numbers = #tpu.dot_dimension_numbers<[1], [0], [0], [1], [0, 0, 1, 1], [], []>} : vector<8x256xbf16>, vector<256x128xbf16>, vector<8x128xf32> -> vector<8x128xf32>
    %c0_44 = arith.constant 0 : index
    %c0_45 = arith.constant 0 : index
    %45 = vector.load %arg11[%c0_44, %c0_45] : memref<1x128xf32, #tpu.memory_space<vmem>>, vector<1x128xf32>
    %46 = vector.broadcast %45 : vector<1x128xf32> to vector<8x128xf32>
    %47 = arith.addf %44, %46 : vector<8x128xf32>
    %c1_i32 = arith.constant 1 : i32
    %48 = tpu.dynamic_rotate %47 by %c1_i32 dim 1 : vector<8x128xf32>, i32 -> vector<8x128xf32>
    %49 = arith.maximumf %47, %48 : vector<8x128xf32>
    %c2_i32 = arith.constant 2 : i32
    %50 = tpu.dynamic_rotate %49 by %c2_i32 dim 1 : vector<8x128xf32>, i32 -> vector<8x128xf32>
    %51 = arith.maximumf %49, %50 : vector<8x128xf32>
    %c0_46 = arith.constant 0 : index
    %c0_47 = arith.constant 0 : index
    %52 = vector.load %arg13[%c0_46, %c0_47] : memref<128x128xf32, #tpu.memory_space<vmem>>, vector<128x128xf32>
    %cst_48 = arith.constant dense<0.000000e+00> : vector<8x128xf32>
    %53 = tpu.matmul %51, %52, %cst_48 {dimension_numbers = #tpu.dot_dimension_numbers<[1], [0], [0], [1], [0, 0, 1, 1], [], []>} : vector<8x128xf32>, vector<128x128xf32>, vector<8x128xf32> -> vector<8x128xf32>
    %54 = arith.subf %47, %53 : vector<8x128xf32>
    %55 = math.exp %54 : vector<8x128xf32>
    %c0_49 = arith.constant 0 : index
    %c0_50 = arith.constant 0 : index
    %56 = vector.load %arg12[%c0_49, %c0_50] : memref<128x128xf32, #tpu.memory_space<vmem>>, vector<128x128xf32>
    %cst_51 = arith.constant dense<0.000000e+00> : vector<8x128xf32>
    %57 = tpu.matmul %55, %56, %cst_51 {dimension_numbers = #tpu.dot_dimension_numbers<[1], [0], [0], [1], [0, 0, 1, 1], [], []>} : vector<8x128xf32>, vector<128x128xf32>, vector<8x128xf32> -> vector<8x128xf32>
    %58 = tpu.reciprocal %57 : vector<8x128xf32> -> vector<8x128xf32>
    %59 = arith.mulf %55, %58 : vector<8x128xf32>
    %c0_52 = arith.constant 0 : index
    %c0_53 = arith.constant 0 : index
    %c0_54 = arith.constant 0 : index
    %60 = vector.load %arg14[%c0_52, %c0_53, %c0_54] : memref<1x8x128xf32, #tpu.memory_space<vmem>>, vector<1x8x128xf32>
    %61 = vector.shape_cast %60 : vector<1x8x128xf32> to vector<8x128xf32>
    %62 = vector.shape_cast %59 : vector<8x128xf32> to vector<1x8x128xf32>
    tpu.vector_store %arg14[%c0_52, %c0_53, %c0_54], %62 {strides = array<i32>} : memref<1x8x128xf32, #tpu.memory_space<vmem>>, vector<1x8x128xf32>,
    return
  }
  func.func @transform_0(%arg0: i32) -> (i32, i32, i32) {
    %c0_i32 = arith.constant 0 : i32
    %c0_i32_0 = arith.constant 0 : i32
    %c0_i32_1 = arith.constant 0 : i32
    return %arg0, %c0_i32, %c0_i32_0 : i32, i32, i32
  }
  func.func @transform_1(%arg0: i32) -> (i32, i32) {
    %c0_i32 = arith.constant 0 : i32
    %c0_i32_0 = arith.constant 0 : i32
    %c0_i32_1 = arith.constant 0 : i32
    return %c0_i32, %c0_i32_0 : i32, i32
  }
  func.func @transform_2(%arg0: i32) -> (i32, i32) {
    %c0_i32 = arith.constant 0 : i32
    %c0_i32_0 = arith.constant 0 : i32
    %c0_i32_1 = arith.constant 0 : i32
    return %c0_i32, %c0_i32_0 : i32, i32
  }
  func.func @transform_3(%arg0: i32) -> (i32, i32) {
    %c0_i32 = arith.constant 0 : i32
    %c0_i32_0 = arith.constant 0 : i32
    %c0_i32_1 = arith.constant 0 : i32
    return %c0_i32, %c0_i32_0 : i32, i32
  }
  func.func @transform_4(%arg0: i32) -> (i32, i32) {
    %c0_i32 = arith.constant 0 : i32
    %c0_i32_0 = arith.constant 0 : i32
    %c0_i32_1 = arith.constant 0 : i32
    return %c0_i32, %c0_i32_0 : i32, i32
  }
  func.func @transform_5(%arg0: i32) -> (i32, i32) {
    %c0_i32 = arith.constant 0 : i32
    %c0_i32_0 = arith.constant 0 : i32
    %c0_i32_1 = arith.constant 0 : i32
    return %c0_i32, %c0_i32_0 : i32, i32
  }
  func.func @transform_6(%arg0: i32) -> (i32, i32) {
    %c0_i32 = arith.constant 0 : i32
    %c0_i32_0 = arith.constant 0 : i32
    %c0_i32_1 = arith.constant 0 : i32
    return %c0_i32, %c0_i32_0 : i32, i32
  }
  func.func @transform_7(%arg0: i32) -> (i32, i32) {
    %c0_i32 = arith.constant 0 : i32
    %c0_i32_0 = arith.constant 0 : i32
    %c0_i32_1 = arith.constant 0 : i32
    return %c0_i32, %c0_i32_0 : i32, i32
  }
  func.func @transform_8(%arg0: i32) -> (i32, i32) {
    %c0_i32 = arith.constant 0 : i32
    %c0_i32_0 = arith.constant 0 : i32
    %c0_i32_1 = arith.constant 0 : i32
    return %c0_i32, %c0_i32_0 : i32, i32
  }
  func.func @transform_9(%arg0: i32) -> (i32, i32) {
    %c0_i32 = arith.constant 0 : i32
    %c0_i32_0 = arith.constant 0 : i32
    %c0_i32_1 = arith.constant 0 : i32
    return %c0_i32, %c0_i32_0 : i32, i32
  }
  func.func @transform_10(%arg0: i32) -> (i32, i32) {
    %c0_i32 = arith.constant 0 : i32
    %c0_i32_0 = arith.constant 0 : i32
    %c0_i32_1 = arith.constant 0 : i32
    return %c0_i32, %c0_i32_0 : i32, i32
  }
  func.func @transform_11(%arg0: i32) -> (i32, i32) {
    %c0_i32 = arith.constant 0 : i32
    %c0_i32_0 = arith.constant 0 : i32
    %c0_i32_1 = arith.constant 0 : i32
    return %c0_i32, %c0_i32_0 : i32, i32
  }
  func.func @transform_12(%arg0: i32) -> (i32, i32) {
    %c0_i32 = arith.constant 0 : i32
    %c0_i32_0 = arith.constant 0 : i32
    %c0_i32_1 = arith.constant 0 : i32
    return %c0_i32, %c0_i32_0 : i32, i32
  }
  func.func @transform_13(%arg0: i32) -> (i32, i32, i32) {
    %c0_i32 = arith.constant 0 : i32
    %c0_i32_0 = arith.constant 0 : i32
    %c0_i32_1 = arith.constant 0 : i32
    return %arg0, %c0_i32, %c0_i32_0 : i32, i32, i32
  }
}

</mosaic_0001>

<llo_original>
// kernel: last2d_forward.1
$region0: #{last2d_forward.1}
  #allocation0 [shape = 'u32[]', space=smem, size = 0x4, offset = 0x4, fixed_abs, tag = 'smem constant byte address 0x4 - core index']
  #allocation1 [shape = 'u32[144,128]{1,0:T(1,128)}', space=vmem, size = 0x12000, scoped, tag = 'internal scratch']
  #allocation2 [shape = 'f32[10,256]{1,0:T(8,128)}', space=vmem, size = 0x4000, scoped, tag = 'scratch operand']
  %s0 = inlined_call_operand.vmem [shape: bf16[2,10,128], index: 0, kind: input, shape index: {}]
  %s1 = inlined_call_operand.hbm [shape: bf16[128,256], index: 1, kind: input, shape index: {}]
  %s2 = inlined_call_operand.hbm [shape: bf16[128,256], index: 2, kind: input, shape index: {}]
  %s3 = inlined_call_operand.hbm [shape: bf16[128,256], index: 3, kind: input, shape index: {}]
  %s4 = inlined_call_operand.vmem [shape: f32[1,256], index: 4, kind: input, shape index: {}]
  %s5 = inlined_call_operand.vmem [shape: bf16[256,256], index: 5, kind: input, shape index: {}]
  %s6 = inlined_call_operand.vmem [shape: bf16[256,256], index: 6, kind: input, shape index: {}]
  %s7 = inlined_call_operand.vmem [shape: bf16[256,256], index: 7, kind: input, shape index: {}]
  %s8 = inlined_call_operand.vmem [shape: f32[1,256], index: 8, kind: input, shape index: {}]
  %s9 = inlined_call_operand.hbm [shape: bf16[256,128], index: 9, kind: input, shape index: {}]
  %s10 = inlined_call_operand.vmem [shape: f32[1,128], index: 10, kind: input, shape index: {}]
  %s11 = inlined_call_operand.hbm [shape: f32[128,128], index: 11, kind: input, shape index: {}]
  %s12 = inlined_call_operand.hbm [shape: f32[128,128], index: 12, kind: input, shape index: {}]
  %s13 = inlined_call_operand.vmem [shape: f32[2,8,128], index: 13, kind: output, shape index: {}]
  %s14 = sld [smem:[#allocation0]]
  $region109: #{last2d_forward.1} parent=0
    _
  %s16 = ssub.s32 1, %s14
  %s17 = scalar_select 0, %s16, %s14
  $region1: #{last2d_forward.1} parent=0
    #allocation3 [shape = 'u8[65536]{0}', space=vmem, size = 0x10000, scoped, tag = 'input window, operand 1, single buffered']
    #allocation4 [shape = 's32[2]{0}', space=sflag, size = 0x8, scoped, tag = 'scoped memory for last2d_forward.1']
    #allocation5 [shape = 'u8[65536]{0}', space=vmem, size = 0x10000, scoped, tag = 'input window, operand 2, single buffered']
    #allocation6 [shape = 's32[1]{0}', space=sflag, size = 0x4, scoped, tag = 'scoped memory for last2d_forward.1']
    #allocation7 [shape = 'u8[65536]{0}', space=vmem, size = 0x10000, scoped, tag = 'input window, operand 3, single buffered']
    #allocation8 [shape = 'u8[65536]{0}', space=vmem, size = 0x10000, scoped, tag = 'input window, operand 9, single buffered']
    #allocation9 [shape = 's32[1]{0}', space=sflag, size = 0x4, scoped, tag = 'scoped memory for last2d_forward.1']
    #allocation10 [shape = 'u8[65536]{0}', space=vmem, size = 0x10000, scoped, tag = 'input window, operand 11, single buffered']
    #allocation11 [shape = 'u8[65536]{0}', space=vmem, size = 0x10000, scoped, tag = 'input window, operand 12, single buffered']
    #allocation12 [shape = 's32[1]{0}', space=sflag, size = 0x4, scoped, tag = 'scoped memory for last2d_forward.1']
    %18 = vsyncpa [#allocation4], 0
    %19 = vsyncpa [#allocation6], 0
    %20 = vsyncpa [#allocation9], 0
    %21 = vsyncpa [#allocation12], 0
    loop: start=0, step=1, limit=4
    $region2: #{last2d_forward.1} parent=1 // loop_pre_header
      _
    $region3: #{last2d_forward.1} parent=1 // loop_header
      %s23 = sphi 0, %s27
      %p24 = scmp.ge.s32.totalorder %s23, 4
      %s33 = sphi 0, %s35
      %s36 = sphi 0, %s33
      %s37 = sphi 0, %s36
      %s53 = sphi 0, %s37
      %s57 = sphi 0, %s57
      %s59 = sphi 0, %s57
      %s60 = sphi 0, %s59
      %s74 = sphi 0, %s60
      %s78 = sphi 0, %s78
      %s80 = sphi 0, %s78
      %s81 = sphi 0, %s80
      %s95 = sphi 0, %s81
      %s99 = sphi 0, %s99
      %s101 = sphi 0, %s99
      %s102 = sphi 0, %s101
      %s116 = sphi 0, %s102
      %s120 = sphi 0, %s120
      %s122 = sphi 0, %s120
      %s123 = sphi 0, %s122
      %s137 = sphi 0, %s123
      %s141 = sphi 0, %s141
      %s143 = sphi 0, %s141
      %s144 = sphi 0, %s143
      %s158 = sphi 0, %s144
      %s162 = sphi 0, %s162
      %s164 = sphi 0, %s162
      %s165 = sphi 0, %s164
      %s179 = sphi 0, %s165
      %s183 = sphi 0, %s183
      %s185 = sphi 0, %s183
      %s186 = sphi 0, %s185
      %s200 = sphi 0, %s186
      %s204 = sphi 0, %s204
      %s206 = sphi 0, %s204
      %s207 = sphi 0, %s206
      %s221 = sphi 0, %s207
      %s225 = sphi 0, %s225
      %s227 = sphi 0, %s225
      %s228 = sphi 0, %s227
      %s242 = sphi 0, %s228
      %s246 = sphi 0, %s246
      %s248 = sphi 0, %s246
      %s249 = sphi 0, %s248
      %s263 = sphi 0, %s249
      %s267 = sphi 0, %s267
      %s269 = sphi 0, %s267
      %s270 = sphi 0, %s269
      %s284 = sphi 0, %s270
      %s288 = sphi 0, %s288
      %s290 = sphi 0, %s288
      %s291 = sphi 0, %s290
      %s305 = sphi 0, %s291
      %s311 = sphi 0, %s313
      %s314 = sphi 0, %s311
      %s315 = sphi 0, %s314
      %s331 = sphi 0, %s315
    $region4: #{last2d_forward.1} parent=1 // loop_header_branch
      %26 = sbr.rel (%p24) target = $region8
    $region5: #{last2d_forward.1} parent=1 // loop_body
      %s28 = ssub.s32 %s23, 1
      %s29 = ssub.s32 %s23, 2
      %s30 = sadd.s32 %s23, 1
      %s31 = ssub.s32 %s23, %s30
      %p32 = scmp.eq.s32.totalorder %s31, 0
      %s34 = sadd.s32 %s33, 1
      %s35 = scalar_select %p32, %s33, %s34
      %p38 = pneg %p32
      %p39 = scmp.eq.s32.totalorder %s23, 1
      %p40 = por %p38, %p39
      %p41 = scmp.ne.s32.totalorder %s33, %s36
      %p42 = scmp.eq.s32.totalorder %s23, 0
      %p43 = por %p41, %p42
      %p44 = scmp.ne.s32.totalorder %s33, %s36
      %p45 = scmp.eq.s32.totalorder %s28, 1
      %p46 = por %p44, %p45
      %p47 = scmp.ne.s32.totalorder %s36, %s37
      %p48 = scmp.eq.s32.totalorder %s28, 0
      %p49 = por %p47, %p48
      %p50 = scmp.ne.s32.totalorder %s36, %s37
      %p51 = scmp.eq.s32.totalorder %s29, 1
      %p52 = por %p50, %p51
      %p54 = scmp.ne.s32.totalorder %s37, %s53
      %p55 = scmp.eq.s32.totalorder %s29, 0
      %p56 = por %p54, %p55
      %s58 = sadd.s32 %s57, 1
      %p61 = scmp.eq.s32.totalorder %s23, 1
      %p62 = scmp.ne.s32.totalorder %s57, %s59
      %p63 = scmp.eq.s32.totalorder %s23, 0
      %p64 = por %p62, %p63
      %p65 = scmp.ne.s32.totalorder %s57, %s59
      %p66 = scmp.eq.s32.totalorder %s28, 1
      %p67 = por %p65, %p66
      %p68 = scmp.ne.s32.totalorder %s59, %s60
      %p69 = scmp.eq.s32.totalorder %s28, 0
      %p70 = por %p68, %p69
      %p71 = scmp.ne.s32.totalorder %s59, %s60
      %p72 = scmp.eq.s32.totalorder %s29, 1
      %p73 = por %p71, %p72
      %p75 = scmp.ne.s32.totalorder %s60, %s74
      %p76 = scmp.eq.s32.totalorder %s29, 0
      %p77 = por %p75, %p76
      %s79 = sadd.s32 %s78, 1
      %p82 = scmp.eq.s32.totalorder %s23, 1
      %p83 = scmp.ne.s32.totalorder %s78, %s80
      %p84 = scmp.eq.s32.totalorder %s23, 0
      %p85 = por %p83, %p84
      %p86 = scmp.ne.s32.totalorder %s78, %s80
      %p87 = scmp.eq.s32.totalorder %s28, 1
      %p88 = por %p86, %p87
      %p89 = scmp.ne.s32.totalorder %s80, %s81
      %p90 = scmp.eq.s32.totalorder %s28, 0
      %p91 = por %p89, %p90
      %p92 = scmp.ne.s32.totalorder %s80, %s81
      %p93 = scmp.eq.s32.totalorder %s29, 1
      %p94 = por %p92, %p93
      %p96 = scmp.ne.s32.totalorder %s81, %s95
      %p97 = scmp.eq.s32.totalorder %s29, 0
      %p98 = por %p96, %p97
      %s100 = sadd.s32 %s99, 1
      %p103 = scmp.eq.s32.totalorder %s23, 1
      %p104 = scmp.ne.s32.totalorder %s99, %s101
      %p105 = scmp.eq.s32.totalorder %s23, 0
      %p106 = por %p104, %p105
      %p107 = scmp.ne.s32.totalorder %s99, %s101
      %p108 = scmp.eq.s32.totalorder %s28, 1
      %p109 = por %p107, %p108
      %p110 = scmp.ne.s32.totalorder %s101, %s102
      %p111 = scmp.eq.s32.totalorder %s28, 0
      %p112 = por %p110, %p111
      %p113 = scmp.ne.s32.totalorder %s101, %s102
      %p114 = scmp.eq.s32.totalorder %s29, 1
      %p115 = por %p113, %p114
      %p117 = scmp.ne.s32.totalorder %s102, %s116
      %p118 = scmp.eq.s32.totalorder %s29, 0
      %p119 = por %p117, %p118
      %s121 = sadd.s32 %s120, 1
      %p124 = scmp.eq.s32.totalorder %s23, 1
      %p125 = scmp.ne.s32.totalorder %s120, %s122
      %p126 = scmp.eq.s32.totalorder %s23, 0
      %p127 = por %p125, %p126
      %p128 = scmp.ne.s32.totalorder %s120, %s122
      %p129 = scmp.eq.s32.totalorder %s28, 1
      %p130 = por %p128, %p129
      %p131 = scmp.ne.s32.totalorder %s122, %s123
      %p132 = scmp.eq.s32.totalorder %s28, 0
      %p133 = por %p131, %p132
      %p134 = scmp.ne.s32.totalorder %s122, %s123
      %p135 = scmp.eq.s32.totalorder %s29, 1
      %p136 = por %p134, %p135
      %p138 = scmp.ne.s32.totalorder %s123, %s137
      %p139 = scmp.eq.s32.totalorder %s29, 0
      %p140 = por %p138, %p139
      %s142 = sadd.s32 %s141, 1
      %p145 = scmp.eq.s32.totalorder %s23, 1
      %p146 = scmp.ne.s32.totalorder %s141, %s143
      %p147 = scmp.eq.s32.totalorder %s23, 0
      %p148 = por %p146, %p147
      %p149 = scmp.ne.s32.totalorder %s141, %s143
      %p150 = scmp.eq.s32.totalorder %s28, 1
      %p151 = por %p149, %p150
      %p152 = scmp.ne.s32.totalorder %s143, %s144
      %p153 = scmp.eq.s32.totalorder %s28, 0
      %p154 = por %p152, %p153
      %p155 = scmp.ne.s32.totalorder %s143, %s144
      %p156 = scmp.eq.s32.totalorder %s29, 1
      %p157 = por %p155, %p156
      %p159 = scmp.ne.s32.totalorder %s144, %s158
      %p160 = scmp.eq.s32.totalorder %s29, 0
      %p161 = por %p159, %p160
      %s163 = sadd.s32 %s162, 1
      %p166 = scmp.eq.s32.totalorder %s23, 1
      %p167 = scmp.ne.s32.totalorder %s162, %s164
      %p168 = scmp.eq.s32.totalorder %s23, 0
      %p169 = por %p167, %p168
      %p170 = scmp.ne.s32.totalorder %s162, %s164
      %p171 = scmp.eq.s32.totalorder %s28, 1
      %p172 = por %p170, %p171
      %p173 = scmp.ne.s32.totalorder %s164, %s165
      %p174 = scmp.eq.s32.totalorder %s28, 0
      %p175 = por %p173, %p174
      %p176 = scmp.ne.s32.totalorder %s164, %s165
      %p177 = scmp.eq.s32.totalorder %s29, 1
      %p178 = por %p176, %p177
      %p180 = scmp.ne.s32.totalorder %s165, %s179
      %p181 = scmp.eq.s32.totalorder %s29, 0
      %p182 = por %p180, %p181
      %s184 = sadd.s32 %s183, 1
      %p187 = scmp.eq.s32.totalorder %s23, 1
      %p188 = scmp.ne.s32.totalorder %s183, %s185
      %p189 = scmp.eq.s32.totalorder %s23, 0
      %p190 = por %p188, %p189
      %p191 = scmp.ne.s32.totalorder %s183, %s185
      %p192 = scmp.eq.s32.totalorder %s28, 1
      %p193 = por %p191, %p192
      %p194 = scmp.ne.s32.totalorder %s185, %s186
      %p195 = scmp.eq.s32.totalorder %s28, 0
      %p196 = por %p194, %p195
      %p197 = scmp.ne.s32.totalorder %s185, %s186
      %p198 = scmp.eq.s32.totalorder %s29, 1
      %p199 = por %p197, %p198
      %p201 = scmp.ne.s32.totalorder %s186, %s200
      %p202 = scmp.eq.s32.totalorder %s29, 0
      %p203 = por %p201, %p202
      %s205 = sadd.s32 %s204, 1
      %p208 = scmp.eq.s32.totalorder %s23, 1
      %p209 = scmp.ne.s32.totalorder %s204, %s206
      %p210 = scmp.eq.s32.totalorder %s23, 0
      %p211 = por %p209, %p210
      %p212 = scmp.ne.s32.totalorder %s204, %s206
      %p213 = scmp.eq.s32.totalorder %s28, 1
      %p214 = por %p212, %p213
      %p215 = scmp.ne.s32.totalorder %s206, %s207
      %p216 = scmp.eq.s32.totalorder %s28, 0
      %p217 = por %p215, %p216
      %p218 = scmp.ne.s32.totalorder %s206, %s207
      %p219 = scmp.eq.s32.totalorder %s29, 1
      %p220 = por %p218, %p219
      %p222 = scmp.ne.s32.totalorder %s207, %s221
      %p223 = scmp.eq.s32.totalorder %s29, 0
      %p224 = por %p222, %p223
      %s226 = sadd.s32 %s225, 1
      %p229 = scmp.eq.s32.totalorder %s23, 1
      %p230 = scmp.ne.s32.totalorder %s225, %s227
      %p231 = scmp.eq.s32.totalorder %s23, 0
      %p232 = por %p230, %p231
      %p233 = scmp.ne.s32.totalorder %s225, %s227
      %p234 = scmp.eq.s32.totalorder %s28, 1
      %p235 = por %p233, %p234
      %p236 = scmp.ne.s32.totalorder %s227, %s228
      %p237 = scmp.eq.s32.totalorder %s28, 0
      %p238 = por %p236, %p237
      %p239 = scmp.ne.s32.totalorder %s227, %s228
      %p240 = scmp.eq.s32.totalorder %s29, 1
      %p241 = por %p239, %p240
      %p243 = scmp.ne.s32.totalorder %s228, %s242
      %p244 = scmp.eq.s32.totalorder %s29, 0
      %p245 = por %p243, %p244
      %s247 = sadd.s32 %s246, 1
      %p250 = scmp.eq.s32.totalorder %s23, 1
      %p251 = scmp.ne.s32.totalorder %s246, %s248
      %p252 = scmp.eq.s32.totalorder %s23, 0
      %p253 = por %p251, %p252
      %p254 = scmp.ne.s32.totalorder %s246, %s248
      %p255 = scmp.eq.s32.totalorder %s28, 1
      %p256 = por %p254, %p255
      %p257 = scmp.ne.s32.totalorder %s248, %s249
      %p258 = scmp.eq.s32.totalorder %s28, 0
      %p259 = por %p257, %p258
      %p260 = scmp.ne.s32.totalorder %s248, %s249
      %p261 = scmp.eq.s32.totalorder %s29, 1
      %p262 = por %p260, %p261
      %p264 = scmp.ne.s32.totalorder %s249, %s263
      %p265 = scmp.eq.s32.totalorder %s29, 0
      %p266 = por %p264, %p265
      %s268 = sadd.s32 %s267, 1
      %p271 = scmp.eq.s32.totalorder %s23, 1
      %p272 = scmp.ne.s32.totalorder %s267, %s269
      %p273 = scmp.eq.s32.totalorder %s23, 0
      %p274 = por %p272, %p273
      %p275 = scmp.ne.s32.totalorder %s267, %s269
      %p276 = scmp.eq.s32.totalorder %s28, 1
      %p277 = por %p275, %p276
      %p278 = scmp.ne.s32.totalorder %s269, %s270
      %p279 = scmp.eq.s32.totalorder %s28, 0
      %p280 = por %p278, %p279
      %p281 = scmp.ne.s32.totalorder %s269, %s270
      %p282 = scmp.eq.s32.totalorder %s29, 1
      %p283 = por %p281, %p282
      %p285 = scmp.ne.s32.totalorder %s270, %s284
      %p286 = scmp.eq.s32.totalorder %s29, 0
      %p287 = por %p285, %p286
      %s289 = sadd.s32 %s288, 1
      %p292 = scmp.eq.s32.totalorder %s23, 1
      %p293 = scmp.ne.s32.totalorder %s288, %s290
      %p294 = scmp.eq.s32.totalorder %s23, 0
      %p295 = por %p293, %p294
      %p296 = scmp.ne.s32.totalorder %s288, %s290
      %p297 = scmp.eq.s32.totalorder %s28, 1
      %p298 = por %p296, %p297
      %p299 = scmp.ne.s32.totalorder %s290, %s291
      %p300 = scmp.eq.s32.totalorder %s28, 0
      %p301 = por %p299, %p300
      %p302 = scmp.ne.s32.totalorder %s290, %s291
      %p303 = scmp.eq.s32.totalorder %s29, 1
      %p304 = por %p302, %p303
      %p306 = scmp.ne.s32.totalorder %s291, %s305
      %p307 = scmp.eq.s32.totalorder %s29, 0
      %p308 = por %p306, %p307
      %s309 = ssub.s32 %s23, %s30
      %p310 = scmp.eq.s32.totalorder %s309, 0
      %s312 = sadd.s32 %s311, 1
      %s313 = scalar_select %p310, %s311, %s312
      %p316 = pneg %p310
      %p317 = scmp.eq.s32.totalorder %s23, 1
      %p318 = por %p316, %p317
      %p319 = scmp.ne.s32.totalorder %s311, %s314
      %p320 = scmp.eq.s32.totalorder %s23, 0
      %p321 = por %p319, %p320
      %p322 = scmp.ne.s32.totalorder %s311, %s314
      %p323 = scmp.eq.s32.totalorder %s28, 1
      %p324 = por %p322, %p323
      %p325 = scmp.ne.s32.totalorder %s314, %s315
      %p326 = scmp.eq.s32.totalorder %s28, 0
      %p327 = por %p325, %p326
      %p328 = scmp.ne.s32.totalorder %s314, %s315
      %p329 = scmp.eq.s32.totalorder %s29, 1
      %p330 = por %p328, %p329
      %p332 = scmp.ne.s32.totalorder %s315, %s331
      %p333 = scmp.eq.s32.totalorder %s29, 0
      %p334 = por %p332, %p333
      %p335 = scmp.le.s32.totalorder 1, %s23
      %p336 = scmp.lt.s32.totalorder %s23, 3
      %p337 = pnand %p335, %p336
      %p338 = pneg %p337
      // Predicated region
      $region9: #{last2d_forward.1} parent=5 // pred_check
        _
      $region10: #{last2d_forward.1} parent=5 // pred_check_branch
        %340 = sbr.rel (%p337) target = $region12
      $region11: #{last2d_forward.1} parent=5 // pred_region
        %s341 = ssub.s32 %s23, 1
        // Predicated region
        $region13: #{last2d_forward.1} parent=11 // pred_check
          %p342 = pneg %p70
        $region14: #{last2d_forward.1} parent=11 // pred_check_branch
          %344 = sbr.rel (%p342) target = $region16
        $region15: #{last2d_forward.1} parent=11 // pred_region
          %s346 = ssub.s32 2048, 2048
          %347 = vsyncadd [#allocation4], %s346
          %s348 = sshll.u32 [#allocation3], 4
          %s349 = int_to_ptr.vmem [resolvable:$true] %s348
          %354 = dma.hbm_to_vmem [thread:$0]  %s1, 2048, %s349, [#allocation4], 128, 128, 8
        $region16: #{last2d_forward.1} parent=11 // pred_fallthru
          _
        // Predicated region
        $region17: #{last2d_forward.1} parent=11 // pred_check
          %p355 = pneg %p91
        $region18: #{last2d_forward.1} parent=11 // pred_check_branch
          %357 = sbr.rel (%p355) target = $region20
        $region19: #{last2d_forward.1} parent=11 // pred_region
          %s359 = ssub.s32 2048, 2048
          %360 = vsyncadd [#allocation6], %s359
          %s361 = sshll.u32 [#allocation5], 4
          %s362 = int_to_ptr.vmem [resolvable:$true] %s361
          %367 = dma.hbm_to_vmem [thread:$0]  %s2, 2048, %s362, [#allocation6], 128, 128, 8
        $region20: #{last2d_forward.1} parent=11 // pred_fallthru
          _
        // Predicated region
        $region21: #{last2d_forward.1} parent=11 // pred_check
          %p368 = pneg %p112
        $region22: #{last2d_forward.1} parent=11 // pred_check_branch
          %370 = sbr.rel (%p368) target = $region24
        $region23: #{last2d_forward.1} parent=11 // pred_region
          %s372 = ssub.s32 2048, 2048
          %373 = vsyncadd [#allocation6], %s372
          %s374 = sshll.u32 [#allocation7], 4
          %s375 = int_to_ptr.vmem [resolvable:$true] %s374
          %380 = dma.hbm_to_vmem [thread:$0]  %s3, 2048, %s375, [#allocation6], 128, 128, 8
        $region24: #{last2d_forward.1} parent=11 // pred_fallthru
          _
        // Predicated region
        $region25: #{last2d_forward.1} parent=11 // pred_check
          %p381 = pneg %p133
        $region26: #{last2d_forward.1} parent=11 // pred_check_branch
          %383 = sbr.rel (%p381) target = $region28
        $region27: #{last2d_forward.1} parent=11 // pred_region
          _
        $region28: #{last2d_forward.1} parent=11 // pred_fallthru
          _
        // Predicated region
        $region29: #{last2d_forward.1} parent=11 // pred_check
          %p384 = pneg %p154
        $region30: #{last2d_forward.1} parent=11 // pred_check_branch
          %386 = sbr.rel (%p384) target = $region32
        $region31: #{last2d_forward.1} parent=11 // pred_region
          _
        $region32: #{last2d_forward.1} parent=11 // pred_fallthru
          _
        // Predicated region
        $region33: #{last2d_forward.1} parent=11 // pred_check
          %p387 = pneg %p175
        $region34: #{last2d_forward.1} parent=11 // pred_check_branch
          %389 = sbr.rel (%p387) target = $region36
        $region35: #{last2d_forward.1} parent=11 // pred_region
          _
        $region36: #{last2d_forward.1} parent=11 // pred_fallthru
          _
        // Predicated region
        $region37: #{last2d_forward.1} parent=11 // pred_check
          %p390 = pneg %p196
        $region38: #{last2d_forward.1} parent=11 // pred_check_branch
          %392 = sbr.rel (%p390) target = $region40
        $region39: #{last2d_forward.1} parent=11 // pred_region
          _
        $region40: #{last2d_forward.1} parent=11 // pred_fallthru
          _
        // Predicated region
        $region41: #{last2d_forward.1} parent=11 // pred_check
          %p393 = pneg %p217
        $region42: #{last2d_forward.1} parent=11 // pred_check_branch
          %395 = sbr.rel (%p393) target = $region44
        $region43: #{last2d_forward.1} parent=11 // pred_region
          _
        $region44: #{last2d_forward.1} parent=11 // pred_fallthru
          _
        // Predicated region
        $region45: #{last2d_forward.1} parent=11 // pred_check
          %p396 = pneg %p238
        $region46: #{last2d_forward.1} parent=11 // pred_check_branch
          %398 = sbr.rel (%p396) target = $region48
        $region47: #{last2d_forward.1} parent=11 // pred_region
          %s400 = ssub.s32 2048, 2048
          %401 = vsyncadd [#allocation9], %s400
          %s402 = sshll.u32 [#allocation8], 4
          %s403 = int_to_ptr.vmem [resolvable:$true] %s402
          %408 = dma.hbm_to_vmem [thread:$0]  %s9, 2048, %s403, [#allocation9], 64, 64, 4
        $region48: #{last2d_forward.1} parent=11 // pred_fallthru
          _
        // Predicated region
        $region49: #{last2d_forward.1} parent=11 // pred_check
          %p409 = pneg %p259
        $region50: #{last2d_forward.1} parent=11 // pred_check_branch
          %411 = sbr.rel (%p409) target = $region52
        $region51: #{last2d_forward.1} parent=11 // pred_region
          _
        $region52: #{last2d_forward.1} parent=11 // pred_fallthru
          _
        // Predicated region
        $region53: #{last2d_forward.1} parent=11 // pred_check
          %p412 = pneg %p280
        $region54: #{last2d_forward.1} parent=11 // pred_check_branch
          %414 = sbr.rel (%p412) target = $region56
        $region55: #{last2d_forward.1} parent=11 // pred_region
          %s416 = ssub.s32 2048, 2048
          %417 = vsyncadd [#allocation9], %s416
          %s418 = sshll.u32 [#allocation10], 4
          %s419 = int_to_ptr.vmem [resolvable:$true] %s418
          %424 = dma.hbm_to_vmem [thread:$0]  %s11, 2048, %s419, [#allocation9], 128, 128, 8
        $region56: #{last2d_forward.1} parent=11 // pred_fallthru
          _
        // Predicated region
        $region57: #{last2d_forward.1} parent=11 // pred_check
          %p425 = pneg %p301
        $region58: #{last2d_forward.1} parent=11 // pred_check_branch
          %427 = sbr.rel (%p425) target = $region60
        $region59: #{last2d_forward.1} parent=11 // pred_region
          %s429 = ssub.s32 2048, 2048
          %430 = vsyncadd [#allocation12], %s429
          %s431 = sshll.u32 [#allocation11], 4
          %s432 = int_to_ptr.vmem [resolvable:$true] %s431
          %437 = dma.hbm_to_vmem [thread:$0]  %s12, 2048, %s432, [#allocation12], 128, 128, 8
        $region60: #{last2d_forward.1} parent=11 // pred_fallthru
          _
      $region12: #{last2d_forward.1} parent=5 // pred_fallthru
        _
      %p438 = scmp.lt.s32.totalorder %s23, 2
      // Predicated region
      $region61: #{last2d_forward.1} parent=5 // pred_check
        %p439 = pneg %p438
      $region62: #{last2d_forward.1} parent=5 // pred_check_branch
        %441 = sbr.rel (%p439) target = $region64
      $region63: #{last2d_forward.1} parent=5 // pred_region
        // Predicated region
        $region65: #{last2d_forward.1} parent=63 // pred_check
          %p442 = pneg %p43
        $region66: #{last2d_forward.1} parent=63 // pred_check_branch
          %444 = sbr.rel (%p442) target = $region68
        $region67: #{last2d_forward.1} parent=63 // pred_region
          %p445 = scmp.lt.s32.totalorder %s23, 1
          %s446 = scalar_select %p445, %s23, 1
          %s447 = smul.addr %s446, 2
          %s448 = smul.addr %s447, 4
          %s449 = scalar_lea.vmem %s0, %s448
        $region68: #{last2d_forward.1} parent=63 // pred_fallthru
          _
      $region64: #{last2d_forward.1} parent=5 // pred_fallthru
        _
      %p450 = scmp.le.s32.totalorder 1, %s23
      %p451 = scmp.lt.s32.totalorder %s23, 3
      %p452 = pnand %p450, %p451
      %p453 = pneg %p452
      // Predicated region
      $region69: #{last2d_forward.1} parent=5 // pred_check
        _
      $region70: #{last2d_forward.1} parent=5 // pred_check_branch
        %455 = sbr.rel (%p452) target = $region72
      $region71: #{last2d_forward.1} parent=5 // pred_region
        %s456 = ssub.s32 %s23, 1
        // Predicated region
        $region73: #{last2d_forward.1} parent=71 // pred_check
          %p457 = pneg %p70
        $region74: #{last2d_forward.1} parent=71 // pred_check_branch
          %459 = sbr.rel (%p457) target = $region76
        $region75: #{last2d_forward.1} parent=71 // pred_region
          %460 = dma.done [#allocation4], 2048
        $region76: #{last2d_forward.1} parent=71 // pred_fallthru
          _
        // Predicated region
        $region77: #{last2d_forward.1} parent=71 // pred_check
          %p461 = pneg %p91
        $region78: #{last2d_forward.1} parent=71 // pred_check_branch
          %463 = sbr.rel (%p461) target = $region80
        $region79: #{last2d_forward.1} parent=71 // pred_region
          %464 = dma.done [#allocation6], 2048
        $region80: #{last2d_forward.1} parent=71 // pred_fallthru
          _
        // Predicated region
        $region81: #{last2d_forward.1} parent=71 // pred_check
          %p465 = pneg %p112
        $region82: #{last2d_forward.1} parent=71 // pred_check_branch
          %467 = sbr.rel (%p465) target = $region84
        $region83: #{last2d_forward.1} parent=71 // pred_region
          %468 = dma.done [#allocation6], 2048
        $region84: #{last2d_forward.1} parent=71 // pred_fallthru
          _
        // Predicated region
        $region85: #{last2d_forward.1} parent=71 // pred_check
          %p469 = pneg %p238
        $region86: #{last2d_forward.1} parent=71 // pred_check_branch
          %471 = sbr.rel (%p469) target = $region88
        $region87: #{last2d_forward.1} parent=71 // pred_region
          %472 = dma.done [#allocation9], 2048
        $region88: #{last2d_forward.1} parent=71 // pred_fallthru
          _
        // Predicated region
        $region89: #{last2d_forward.1} parent=71 // pred_check
          %p473 = pneg %p280
        $region90: #{last2d_forward.1} parent=71 // pred_check_branch
          %475 = sbr.rel (%p473) target = $region92
        $region91: #{last2d_forward.1} parent=71 // pred_region
          %476 = dma.done [#allocation9], 2048
        $region92: #{last2d_forward.1} parent=71 // pred_fallthru
          _
        // Predicated region
        $region93: #{last2d_forward.1} parent=71 // pred_check
          %p477 = pneg %p301
        $region94: #{last2d_forward.1} parent=71 // pred_check_branch
          %479 = sbr.rel (%p477) target = $region96
        $region95: #{last2d_forward.1} parent=71 // pred_region
          %480 = dma.done [#allocation12], 2048
        $region96: #{last2d_forward.1} parent=71 // pred_fallthru
          _
        %p481 = scmp.lt.s32.totalorder %s28, 1
        %s482 = scalar_select %p481, %s28, 1
        %s483 = smul.addr %s482, 2
        %s484 = smul.addr %s483, 4
        %s485 = scalar_lea.vmem %s0, %s484
        %p486 = pneg %p49
        %p487 = pneg %p46
        %p488 = pneg %p70
        %p489 = pneg %p67
        %p490 = pneg %p91
        %p491 = pneg %p88
        %p492 = pneg %p112
        %p493 = pneg %p109
        %p494 = pneg %p133
        %p495 = pneg %p130
        %p496 = pneg %p154
        %p497 = pneg %p151
        %p498 = pneg %p175
        %p499 = pneg %p172
        %p500 = pneg %p196
        %p501 = pneg %p193
        %p502 = pneg %p217
        %p503 = pneg %p214
        %p504 = pneg %p238
        %p505 = pneg %p235
        %p506 = pneg %p259
        %p507 = pneg %p256
        %p508 = pneg %p280
        %p509 = pneg %p277
        %p510 = pneg %p301
        %p511 = pneg %p298
        %p512 = pneg %p327
        %p513 = pneg %p324
        %p514 = scmp.lt.s32.totalorder %s28, 1
        %s515 = scalar_select %p514, %s28, 1
        %s516 = smul.addr %s515, 8
        %s517 = scalar_lea.vmem %s13, %s516
        %p518 = scmp.lt.s32.totalorder %s28, 1
        %s519 = scalar_select %p518, %s28, 1
        %s520 = smul.addr %s519, 2
        %s521 = smul.addr %s520, 4
        %s522 = scalar_lea.vmem %s0, %s521
        %p523 = scmp.lt.s32.totalorder %s28, 1
        %s524 = scalar_select %p523, %s28, 1
        %s525 = smul.addr %s524, 8
        %s526 = scalar_lea.vmem %s13, %s525
        %v528 = vld [vmem:[%s522] sm:$0xf]
        %v529 = vld [vmem:[#allocation3] sm:$0xff]
        %v530 = vld [vmem:[#allocation3 + $0x8] sm:$0xff]
        %v531 = vld [vmem:[#allocation3 + $0x10] sm:$0xff]
        %v532 = vld [vmem:[#allocation3 + $0x18] sm:$0xff]
        %v533 = vld [vmem:[#allocation3 + $0x20] sm:$0xff]
        %v534 = vld [vmem:[#allocation3 + $0x28] sm:$0xff]
        %v535 = vld [vmem:[#allocation3 + $0x30] sm:$0xff]
        %v536 = vld [vmem:[#allocation3 + $0x38] sm:$0xff]
        %v537 = vld [vmem:[#allocation3 + $0x40] sm:$0xff]
        %v538 = vld [vmem:[#allocation3 + $0x48] sm:$0xff]
        %v539 = vld [vmem:[#allocation3 + $0x50] sm:$0xff]
        %v540 = vld [vmem:[#allocation3 + $0x58] sm:$0xff]
        %v541 = vld [vmem:[#allocation3 + $0x60] sm:$0xff]
        %v542 = vld [vmem:[#allocation3 + $0x68] sm:$0xff]
        %v543 = vld [vmem:[#allocation3 + $0x70] sm:$0xff]
        %v544 = vld [vmem:[#allocation3 + $0x78] sm:$0xff]
        %v545 = vld [vmem:[%s522 + $0x4] sm:$0x1]
        %v546 = vld [vmem:[#allocation5] sm:$0xff]
        %v547 = vld [vmem:[#allocation5 + $0x8] sm:$0xff]
        %v548 = vld [vmem:[#allocation5 + $0x10] sm:$0xff]
        %v549 = vld [vmem:[#allocation5 + $0x18] sm:$0xff]
        %v550 = vld [vmem:[#allocation5 + $0x20] sm:$0xff]
        %v551 = vld [vmem:[#allocation5 + $0x28] sm:$0xff]
        %v552 = vld [vmem:[#allocation5 + $0x30] sm:$0xff]
        %v553 = vld [vmem:[#allocation5 + $0x38] sm:$0xff]
        %v554 = vld [vmem:[#allocation5 + $0x40] sm:$0xff]
        %v555 = vld [vmem:[#allocation5 + $0x48] sm:$0xff]
        %v556 = vld [vmem:[#allocation5 + $0x50] sm:$0xff]
        %v557 = vld [vmem:[#allocation5 + $0x58] sm:$0xff]
        %v558 = vld [vmem:[#allocation5 + $0x60] sm:$0xff]
        %v559 = vld [vmem:[#allocation5 + $0x68] sm:$0xff]
        %v560 = vld [vmem:[#allocation5 + $0x70] sm:$0xff]
        %v561 = vld [vmem:[#allocation5 + $0x78] sm:$0xff]
        %v564 = vunpack.c.l.b16 %v528
        %v565 = vunpack.c.l.b16 %v545
        %v566 = vpack.c.b16 %v565, %v564
        %v568 = vshrl.u32 %v566, 16
        %v570 = vshll.u32 %v566, 16
        %v572 = vrot.slane %v570, 1
        %v573 = vor.u32 %v568, %v572
        %v591 = vunpack.c.l.b16 %v546
        %v592 = vunpack.c.h.b16 %v546
        %v593 = vunpack.c.l.b16 %v547
        %v594 = vunpack.c.h.b16 %v547
        %v595 = vunpack.c.l.b16 %v548
        %v596 = vunpack.c.h.b16 %v548
        %v597 = vunpack.c.l.b16 %v549
        %v598 = vunpack.c.h.b16 %v549
        %v599 = vunpack.c.l.b16 %v550
        %v600 = vunpack.c.h.b16 %v550
        %v601 = vunpack.c.l.b16 %v551
        %v602 = vunpack.c.h.b16 %v551
        %v603 = vunpack.c.l.b16 %v552
        %v604 = vunpack.c.h.b16 %v552
        %v605 = vunpack.c.l.b16 %v553
        %v606 = vunpack.c.h.b16 %v553
        %v607 = vunpack.c.l.b16 %v554
        %v608 = vunpack.c.h.b16 %v554
        %v609 = vunpack.c.l.b16 %v555
        %v610 = vunpack.c.h.b16 %v555
        %v611 = vunpack.c.l.b16 %v556
        %v612 = vunpack.c.h.b16 %v556
        %v613 = vunpack.c.l.b16 %v557
        %v614 = vunpack.c.h.b16 %v557
        %v615 = vunpack.c.l.b16 %v558
        %v616 = vunpack.c.h.b16 %v558
        %v617 = vunpack.c.l.b16 %v559
        %v618 = vunpack.c.h.b16 %v559
        %v619 = vunpack.c.l.b16 %v560
        %v620 = vunpack.c.h.b16 %v560
        %v621 = vunpack.c.l.b16 %v561
        %v622 = vunpack.c.h.b16 %v561
        %v623 = vpack.c.b16 %v593, %v591
        %v624 = vpack.c.b16 %v594, %v592
        %v625 = vpack.c.b16 %v597, %v595
        %v626 = vpack.c.b16 %v598, %v596
        %v627 = vpack.c.b16 %v601, %v599
        %v628 = vpack.c.b16 %v602, %v600
        %v629 = vpack.c.b16 %v605, %v603
        %v630 = vpack.c.b16 %v606, %v604
        %v631 = vpack.c.b16 %v609, %v607
        %v632 = vpack.c.b16 %v610, %v608
        %v633 = vpack.c.b16 %v613, %v611
        %v634 = vpack.c.b16 %v614, %v612
        %v635 = vpack.c.b16 %v617, %v615
        %v636 = vpack.c.b16 %v618, %v616
        %v637 = vpack.c.b16 %v621, %v619
        %v638 = vpack.c.b16 %v622, %v620
        %655 = vmatprep.subr.bf16.mxu0 %v638
        %656 = vmatpush1.bf16.msra.mxu0 %v637
        %657 = vmatprep.subr.bf16.mxu0 %v636
        %658 = vmatpush1.bf16.msra.mxu0 %v635
        %659 = vmatprep.subr.bf16.mxu0 %v634
        %660 = vmatpush1.bf16.msra.mxu0 %v633
        %661 = vmatprep.subr.bf16.mxu0 %v632
        %662 = vmatpush1.bf16.msra.mxu0 %v631
        %663 = vmatprep.subr.bf16.mxu0 %v630
        %664 = vmatpush1.bf16.msra.mxu0 %v629
        %665 = vmatprep.subr.bf16.mxu0 %v628
        %666 = vmatpush1.bf16.msra.mxu0 %v627
        %667 = vmatprep.subr.bf16.mxu0 %v626
        %668 = vmatpush1.bf16.msra.mxu0 %v625
        %669 = vmatprep.subr.bf16.mxu0 %v624
        %670 = vmatpush1.bf16.msra.mxu0 %v623
        %671 = vmatprep.subr.bf16.mxu0 0
        %672 = vmatpush2.bf16.msra.mxu0 0
        %673 = vmatprep.subr.bf16.mxu0 0
        %674 = vmatpush2.bf16.msra.mxu0 0
        %675 = vmatprep.subr.bf16.mxu0 0
        %676 = vmatpush2.bf16.msra.mxu0 0
        %677 = vmatprep.subr.bf16.mxu0 0
        %678 = vmatpush2.bf16.msra.mxu0 0
        %679 = vmatprep.subr.bf16.mxu0 0
        %680 = vmatpush2.bf16.msra.mxu0 0
        %681 = vmatprep.subr.bf16.mxu0 0
        %682 = vmatpush2.bf16.msra.mxu0 0
        %683 = vmatprep.subr.bf16.mxu0 0
        %684 = vmatpush2.bf16.msra.mxu0 0
        %685 = vmatprep.subr.bf16.mxu0 0
        %686 = vmatpush2.bf16.msra.mxu0 0
        %687 = vmatprep.mubr.bf16.mxu0 0
        %688 = vmatmul.mubr.bf16.gmra.mxu0 %v573
        %v689 = vpop.f32.mrf.mxu0
        %v690 = vadd.f32 0.0, %v689
        %v691 = vpop.f32.mrf.mxu0
        %v692 = vadd.f32 0.0, %v691
        %v693 = vpop.f32.mrf.mxu0
        %v694 = vpop.f32.mrf.mxu0
        %695 = vdwg.mxu0
        %v712 = vunpack.c.l.b16 %v529
        %v713 = vunpack.c.h.b16 %v529
        %v714 = vunpack.c.l.b16 %v530
        %v715 = vunpack.c.h.b16 %v530
        %v716 = vunpack.c.l.b16 %v531
        %v717 = vunpack.c.h.b16 %v531
        %v718 = vunpack.c.l.b16 %v532
        %v719 = vunpack.c.h.b16 %v532
        %v720 = vunpack.c.l.b16 %v533
        %v721 = vunpack.c.h.b16 %v533
        %v722 = vunpack.c.l.b16 %v534
        %v723 = vunpack.c.h.b16 %v534
        %v724 = vunpack.c.l.b16 %v535
        %v725 = vunpack.c.h.b16 %v535
        %v726 = vunpack.c.l.b16 %v536
        %v727 = vunpack.c.h.b16 %v536
        %v728 = vunpack.c.l.b16 %v537
        %v729 = vunpack.c.h.b16 %v537
        %v730 = vunpack.c.l.b16 %v538
        %v731 = vunpack.c.h.b16 %v538
        %v732 = vunpack.c.l.b16 %v539
        %v733 = vunpack.c.h.b16 %v539
        %v734 = vunpack.c.l.b16 %v540
        %v735 = vunpack.c.h.b16 %v540
        %v736 = vunpack.c.l.b16 %v541
        %v737 = vunpack.c.h.b16 %v541
        %v738 = vunpack.c.l.b16 %v542
        %v739 = vunpack.c.h.b16 %v542
        %v740 = vunpack.c.l.b16 %v543
        %v741 = vunpack.c.h.b16 %v543
        %v742 = vunpack.c.l.b16 %v544
        %v743 = vunpack.c.h.b16 %v544
        %v744 = vpack.c.b16 %v714, %v712
        %v745 = vpack.c.b16 %v715, %v713
        %v746 = vpack.c.b16 %v718, %v716
        %v747 = vpack.c.b16 %v719, %v717
        %v748 = vpack.c.b16 %v722, %v720
        %v749 = vpack.c.b16 %v723, %v721
        %v750 = vpack.c.b16 %v726, %v724
        %v751 = vpack.c.b16 %v727, %v725
        %v752 = vpack.c.b16 %v730, %v728
        %v753 = vpack.c.b16 %v731, %v729
        %v754 = vpack.c.b16 %v734, %v732
        %v755 = vpack.c.b16 %v735, %v733
        %v756 = vpack.c.b16 %v738, %v736
        %v757 = vpack.c.b16 %v739, %v737
        %v758 = vpack.c.b16 %v742, %v740
        %v759 = vpack.c.b16 %v743, %v741
        %776 = vmatprep.subr.bf16.mxu0 %v759
        %777 = vmatpush1.bf16.msra.mxu0 %v758
        %778 = vmatprep.subr.bf16.mxu0 %v757
        %779 = vmatpush1.bf16.msra.mxu0 %v756
        %780 = vmatprep.subr.bf16.mxu0 %v755
        %781 = vmatpush1.bf16.msra.mxu0 %v754
        %782 = vmatprep.subr.bf16.mxu0 %v753
        %783 = vmatpush1.bf16.msra.mxu0 %v752
        %784 = vmatprep.subr.bf16.mxu0 %v751
        %785 = vmatpush1.bf16.msra.mxu0 %v750
        %786 = vmatprep.subr.bf16.mxu0 %v749
        %787 = vmatpush1.bf16.msra.mxu0 %v748
        %788 = vmatprep.subr.bf16.mxu0 %v747
        %789 = vmatpush1.bf16.msra.mxu0 %v746
        %790 = vmatprep.subr.bf16.mxu0 %v745
        %791 = vmatpush1.bf16.msra.mxu0 %v744
        %792 = vmatprep.subr.bf16.mxu0 0
        %793 = vmatpush2.bf16.msra.mxu0 0
        %794 = vmatprep.subr.bf16.mxu0 0
        %795 = vmatpush2.bf16.msra.mxu0 0
        %796 = vmatprep.subr.bf16.mxu0 0
        %797 = vmatpush2.bf16.msra.mxu0 0
        %798 = vmatprep.subr.bf16.mxu0 0
        %799 = vmatpush2.bf16.msra.mxu0 0
        %800 = vmatprep.subr.bf16.mxu0 0
        %801 = vmatpush2.bf16.msra.mxu0 0
        %802 = vmatprep.subr.bf16.mxu0 0
        %803 = vmatpush2.bf16.msra.mxu0 0
        %804 = vmatprep.subr.bf16.mxu0 0
        %805 = vmatpush2.bf16.msra.mxu0 0
        %806 = vmatprep.subr.bf16.mxu0 0
        %807 = vmatpush2.bf16.msra.mxu0 0
        %808 = vmatprep.mubr.bf16.mxu0 0
        %809 = vmatmul.mubr.bf16.gmra.mxu0 %v528
        %v810 = vpop.f32.mrf.mxu0
        %v811 = vadd.f32 %v690, %v810
        %v812 = vpop.f32.mrf.mxu0
        %v813 = vadd.f32 %v692, %v812
        %v814 = vpop.f32.mrf.mxu0
        %v815 = vpop.f32.mrf.mxu0
        %816 = vdwg.mxu0
        %v817 = vld [vmem:[%s522] sm:$0xe]
        %v818 = vld [vmem:[#allocation7] sm:$0xff]
        %v819 = vld [vmem:[#allocation7 + $0x8] sm:$0xff]
        %v820 = vld [vmem:[#allocation7 + $0x10] sm:$0xff]
        %v821 = vld [vmem:[#allocation7 + $0x18] sm:$0xff]
        %v822 = vld [vmem:[#allocation7 + $0x20] sm:$0xff]
        %v823 = vld [vmem:[#allocation7 + $0x28] sm:$0xff]
        %v824 = vld [vmem:[#allocation7 + $0x30] sm:$0xff]
        %v825 = vld [vmem:[#allocation7 + $0x38] sm:$0xff]
        %v826 = vld [vmem:[#allocation7 + $0x40] sm:$0xff]
        %v827 = vld [vmem:[#allocation7 + $0x48] sm:$0xff]
        %v828 = vld [vmem:[#allocation7 + $0x50] sm:$0xff]
        %v829 = vld [vmem:[#allocation7 + $0x58] sm:$0xff]
        %v830 = vld [vmem:[#allocation7 + $0x60] sm:$0xff]
        %v831 = vld [vmem:[#allocation7 + $0x68] sm:$0xff]
        %v832 = vld [vmem:[#allocation7 + $0x70] sm:$0xff]
        %v833 = vld [vmem:[#allocation7 + $0x78] sm:$0xff]
        %v835 = vunpack.c.l.b16 %v817
        %v836 = vpack.c.b16 %v565, %v835
        %v837 = vrot.slane %v836, 1
        %v855 = vunpack.c.l.b16 %v818
        %v856 = vunpack.c.h.b16 %v818
        %v857 = vunpack.c.l.b16 %v819
        %v858 = vunpack.c.h.b16 %v819
        %v859 = vunpack.c.l.b16 %v820
        %v860 = vunpack.c.h.b16 %v820
        %v861 = vunpack.c.l.b16 %v821
        %v862 = vunpack.c.h.b16 %v821
        %v863 = vunpack.c.l.b16 %v822
        %v864 = vunpack.c.h.b16 %v822
        %v865 = vunpack.c.l.b16 %v823
        %v866 = vunpack.c.h.b16 %v823
        %v867 = vunpack.c.l.b16 %v824
        %v868 = vunpack.c.h.b16 %v824
        %v869 = vunpack.c.l.b16 %v825
        %v870 = vunpack.c.h.b16 %v825
        %v871 = vunpack.c.l.b16 %v826
        %v872 = vunpack.c.h.b16 %v826
        %v873 = vunpack.c.l.b16 %v827
        %v874 = vunpack.c.h.b16 %v827
        %v875 = vunpack.c.l.b16 %v828
        %v876 = vunpack.c.h.b16 %v828
        %v877 = vunpack.c.l.b16 %v829
        %v878 = vunpack.c.h.b16 %v829
        %v879 = vunpack.c.l.b16 %v830
        %v880 = vunpack.c.h.b16 %v830
        %v881 = vunpack.c.l.b16 %v831
        %v882 = vunpack.c.h.b16 %v831
        %v883 = vunpack.c.l.b16 %v832
        %v884 = vunpack.c.h.b16 %v832
        %v885 = vunpack.c.l.b16 %v833
        %v886 = vunpack.c.h.b16 %v833
        %v887 = vpack.c.b16 %v857, %v855
        %v888 = vpack.c.b16 %v858, %v856
        %v889 = vpack.c.b16 %v861, %v859
        %v890 = vpack.c.b16 %v862, %v860
        %v891 = vpack.c.b16 %v865, %v863
        %v892 = vpack.c.b16 %v866, %v864
        %v893 = vpack.c.b16 %v869, %v867
        %v894 = vpack.c.b16 %v870, %v868
        %v895 = vpack.c.b16 %v873, %v871
        %v896 = vpack.c.b16 %v874, %v872
        %v897 = vpack.c.b16 %v877, %v875
        %v898 = vpack.c.b16 %v878, %v876
        %v899 = vpack.c.b16 %v881, %v879
        %v900 = vpack.c.b16 %v882, %v880
        %v901 = vpack.c.b16 %v885, %v883
        %v902 = vpack.c.b16 %v886, %v884
        %919 = vmatprep.subr.bf16.mxu0 %v902
        %920 = vmatpush1.bf16.msra.mxu0 %v901
        %921 = vmatprep.subr.bf16.mxu0 %v900
        %922 = vmatpush1.bf16.msra.mxu0 %v899
        %923 = vmatprep.subr.bf16.mxu0 %v898
        %924 = vmatpush1.bf16.msra.mxu0 %v897
        %925 = vmatprep.subr.bf16.mxu0 %v896
        %926 = vmatpush1.bf16.msra.mxu0 %v895
        %927 = vmatprep.subr.bf16.mxu0 %v894
        %928 = vmatpush1.bf16.msra.mxu0 %v893
        %929 = vmatprep.subr.bf16.mxu0 %v892
        %930 = vmatpush1.bf16.msra.mxu0 %v891
        %931 = vmatprep.subr.bf16.mxu0 %v890
        %932 = vmatpush1.bf16.msra.mxu0 %v889
        %933 = vmatprep.subr.bf16.mxu0 %v888
        %934 = vmatpush1.bf16.msra.mxu0 %v887
        %935 = vmatprep.subr.bf16.mxu0 0
        %936 = vmatpush2.bf16.msra.mxu0 0
        %937 = vmatprep.subr.bf16.mxu0 0
        %938 = vmatpush2.bf16.msra.mxu0 0
        %939 = vmatprep.subr.bf16.mxu0 0
        %940 = vmatpush2.bf16.msra.mxu0 0
        %941 = vmatprep.subr.bf16.mxu0 0
        %942 = vmatpush2.bf16.msra.mxu0 0
        %943 = vmatprep.subr.bf16.mxu0 0
        %944 = vmatpush2.bf16.msra.mxu0 0
        %945 = vmatprep.subr.bf16.mxu0 0
        %946 = vmatpush2.bf16.msra.mxu0 0
        %947 = vmatprep.subr.bf16.mxu0 0
        %948 = vmatpush2.bf16.msra.mxu0 0
        %949 = vmatprep.subr.bf16.mxu0 0
        %950 = vmatpush2.bf16.msra.mxu0 0
        %951 = vmatprep.mubr.bf16.mxu0 0
        %952 = vmatmul.mubr.bf16.gmra.mxu0 %v837
        %v953 = vpop.f32.mrf.mxu0
        %v954 = vadd.f32 0.0, %v953
        %v955 = vpop.f32.mrf.mxu0
        %v956 = vadd.f32 0.0, %v955
        %v957 = vpop.f32.mrf.mxu0
        %v958 = vpop.f32.mrf.mxu0
        %959 = vdwg.mxu0
        %v960 = vadd.f32 %v811, %v954
        %v961 = vadd.f32 %v813, %v956
        %v962 = vld [vmem:[%s4] sm:$0x3]
        %v964 = vlaneseq
        %v965 = vshrl.u32 %v964, 7
        %v966 = vsub.s32 0, %v965
        %v967 = vrot.slane %v962, %v966
        %v968 = vlaneseq
        %v969 = vshrl.u32 %v968, 7
        %v970 = vsub.s32 1, %v969
        %v971 = vrot.slane %v962, %v970
        %v974 = vadd.f32 %v960, %v967
        %v975 = vadd.f32 %v961, %v971
        %v976 = vmax.f32 %v974, 0.0
        %v977 = vmax.f32 %v975, 0.0
        %v978 = vlaneseq
        %vm979 = vcmp.ge.s32.totalorder %v978, 0
        %vm980 = vcmp.lt.s32.totalorder %v978, 256
        %vm981 = vmand %vm979, %vm980
        %982 = vst.msk [vmem:[#allocation2] ss:$8 sm:$0x3] %vm981, 0.0
        %983 = vst.msk [vmem:[#allocation2] ss:$8 sm:$0x0] %vm981, 0.0
        %s984 = scalar_lea.vmem [#allocation2], 17
        %985 = vst.msk [vmem:[%s984] ss:$8 sm:$0x3] %vm981, 0.0
        %986 = vst.msk [vmem:[%s984] ss:$8 sm:$0x0] %vm981, 0.0
        %v989 = vrot.slane %v976, 7
        %v990 = vrot.slane %v977, 7
        %993 = vst [vmem:[#allocation2] sm:$0xfe] %v989
        %994 = vst [vmem:[#allocation2 + $0x8] sm:$0xfe] %v990
        %995 = vst [vmem:[#allocation2 + $0x10] sm:$0x1] %v989
        %996 = vst [vmem:[#allocation2 + $0x18] sm:$0x1] %v990
        %v997 = vld [vmem:[#allocation2] sm:$0xff]
        %v998 = vld [vmem:[#allocation2 + $0x8] sm:$0xff]
        %v999 = vpack.c.bf16 %v997, %v997
        %v1000 = vpack.c.bf16 %v998, %v998
        %v1001 = vld [vmem:[%s5] sm:$0xff]
        %v1002 = vld [vmem:[%s5 + $0x8] sm:$0xff]
        %v1003 = vld [vmem:[%s5 + $0x10] sm:$0xff]
        %v1004 = vld [vmem:[%s5 + $0x18] sm:$0xff]
        %v1005 = vld [vmem:[%s5 + $0x20] sm:$0xff]
        %v1006 = vld [vmem:[%s5 + $0x28] sm:$0xff]
        %v1007 = vld [vmem:[%s5 + $0x30] sm:$0xff]
        %v1008 = vld [vmem:[%s5 + $0x38] sm:$0xff]
        %v1009 = vld [vmem:[%s5 + $0x40] sm:$0xff]
        %v1010 = vld [vmem:[%s5 + $0x48] sm:$0xff]
        %v1011 = vld [vmem:[%s5 + $0x50] sm:$0xff]
        %v1012 = vld [vmem:[%s5 + $0x58] sm:$0xff]
        %v1013 = vld [vmem:[%s5 + $0x60] sm:$0xff]
        %v1014 = vld [vmem:[%s5 + $0x68] sm:$0xff]
        %v1015 = vld [vmem:[%s5 + $0x70] sm:$0xff]
        %v1016 = vld [vmem:[%s5 + $0x78] sm:$0xff]
        %v1017 = vld [vmem:[%s5 + $0x80] sm:$0xff]
        %v1018 = vld [vmem:[%s5 + $0x88] sm:$0xff]
        %v1019 = vld [vmem:[%s5 + $0x90] sm:$0xff]
        %v1020 = vld [vmem:[%s5 + $0x98] sm:$0xff]
        %v1021 = vld [vmem:[%s5 + $0xa0] sm:$0xff]
        %v1022 = vld [vmem:[%s5 + $0xa8] sm:$0xff]
        %v1023 = vld [vmem:[%s5 + $0xb0] sm:$0xff]
        %v1024 = vld [vmem:[%s5 + $0xb8] sm:$0xff]
        %v1025 = vld [vmem:[%s5 + $0xc0] sm:$0xff]
        %v1026 = vld [vmem:[%s5 + $0xc8] sm:$0xff]
        %v1027 = vld [vmem:[%s5 + $0xd0] sm:$0xff]
        %v1028 = vld [vmem:[%s5 + $0xd8] sm:$0xff]
        %v1029 = vld [vmem:[%s5 + $0xe0] sm:$0xff]
        %v1030 = vld [vmem:[%s5 + $0xe8] sm:$0xff]
        %v1031 = vld [vmem:[%s5 + $0xf0] sm:$0xff]
        %v1032 = vld [vmem:[%s5 + $0xf8] sm:$0xff]
        %v1033 = vld [vmem:[#allocation2] sm:$0xfe]
        %v1034 = vld [vmem:[#allocation2 + $0x8] sm:$0xfe]
        %v1035 = vld [vmem:[#allocation2 + $0x10] sm:$0x1]
        %v1036 = vld [vmem:[#allocation2 + $0x18] sm:$0x1]
        %v1037 = vpack.c.bf16 %v1035, %v1033
        %v1038 = vpack.c.bf16 %v1036, %v1034
        %v1039 = vld [vmem:[%s6] sm:$0xff]
        %v1040 = vld [vmem:[%s6 + $0x8] sm:$0xff]
        %v1041 = vld [vmem:[%s6 + $0x10] sm:$0xff]
        %v1042 = vld [vmem:[%s6 + $0x18] sm:$0xff]
        %v1043 = vld [vmem:[%s6 + $0x20] sm:$0xff]
        %v1044 = vld [vmem:[%s6 + $0x28] sm:$0xff]
        %v1045 = vld [vmem:[%s6 + $0x30] sm:$0xff]
        %v1046 = vld [vmem:[%s6 + $0x38] sm:$0xff]
        %v1047 = vld [vmem:[%s6 + $0x40] sm:$0xff]
        %v1048 = vld [vmem:[%s6 + $0x48] sm:$0xff]
        %v1049 = vld [vmem:[%s6 + $0x50] sm:$0xff]
        %v1050 = vld [vmem:[%s6 + $0x58] sm:$0xff]
        %v1051 = vld [vmem:[%s6 + $0x60] sm:$0xff]
        %v1052 = vld [vmem:[%s6 + $0x68] sm:$0xff]
        %v1053 = vld [vmem:[%s6 + $0x70] sm:$0xff]
        %v1054 = vld [vmem:[%s6 + $0x78] sm:$0xff]
        %v1055 = vld [vmem:[%s6 + $0x80] sm:$0xff]
        %v1056 = vld [vmem:[%s6 + $0x88] sm:$0xff]
        %v1057 = vld [vmem:[%s6 + $0x90] sm:$0xff]
        %v1058 = vld [vmem:[%s6 + $0x98] sm:$0xff]
        %v1059 = vld [vmem:[%s6 + $0xa0] sm:$0xff]
        %v1060 = vld [vmem:[%s6 + $0xa8] sm:$0xff]
        %v1061 = vld [vmem:[%s6 + $0xb0] sm:$0xff]
        %v1062 = vld [vmem:[%s6 + $0xb8] sm:$0xff]
        %v1063 = vld [vmem:[%s6 + $0xc0] sm:$0xff]
        %v1064 = vld [vmem:[%s6 + $0xc8] sm:$0xff]
        %v1065 = vld [vmem:[%s6 + $0xd0] sm:$0xff]
        %v1066 = vld [vmem:[%s6 + $0xd8] sm:$0xff]
        %v1067 = vld [vmem:[%s6 + $0xe0] sm:$0xff]
        %v1068 = vld [vmem:[%s6 + $0xe8] sm:$0xff]
        %v1069 = vld [vmem:[%s6 + $0xf0] sm:$0xff]
        %v1070 = vld [vmem:[%s6 + $0xf8] sm:$0xff]
        %v1072 = vshrl.u32 %v1037, 16
        %v1074 = vshll.u32 %v1037, 16
        %v1076 = vrot.slane %v1074, 1
        %v1077 = vor.u32 %v1072, %v1076
        %v1079 = vshrl.u32 %v1038, 16
        %v1081 = vshll.u32 %v1038, 16
        %v1083 = vrot.slane %v1081, 1
        %v1084 = vor.u32 %v1079, %v1083
        %v1119 = vunpack.c.l.b16 %v1039
        %v1120 = vunpack.c.h.b16 %v1039
        %v1121 = vunpack.c.l.b16 %v1040
        %v1122 = vunpack.c.h.b16 %v1040
        %v1123 = vunpack.c.l.b16 %v1041
        %v1124 = vunpack.c.h.b16 %v1041
        %v1125 = vunpack.c.l.b16 %v1042
        %v1126 = vunpack.c.h.b16 %v1042
        %v1127 = vunpack.c.l.b16 %v1043
        %v1128 = vunpack.c.h.b16 %v1043
        %v1129 = vunpack.c.l.b16 %v1044
        %v1130 = vunpack.c.h.b16 %v1044
        %v1131 = vunpack.c.l.b16 %v1045
        %v1132 = vunpack.c.h.b16 %v1045
        %v1133 = vunpack.c.l.b16 %v1046
        %v1134 = vunpack.c.h.b16 %v1046
        %v1135 = vunpack.c.l.b16 %v1047
        %v1136 = vunpack.c.h.b16 %v1047
        %v1137 = vunpack.c.l.b16 %v1048
        %v1138 = vunpack.c.h.b16 %v1048
        %v1139 = vunpack.c.l.b16 %v1049
        %v1140 = vunpack.c.h.b16 %v1049
        %v1141 = vunpack.c.l.b16 %v1050
        %v1142 = vunpack.c.h.b16 %v1050
        %v1143 = vunpack.c.l.b16 %v1051
        %v1144 = vunpack.c.h.b16 %v1051
        %v1145 = vunpack.c.l.b16 %v1052
        %v1146 = vunpack.c.h.b16 %v1052
        %v1147 = vunpack.c.l.b16 %v1053
        %v1148 = vunpack.c.h.b16 %v1053
        %v1149 = vunpack.c.l.b16 %v1054
        %v1150 = vunpack.c.h.b16 %v1054
        %v1151 = vunpack.c.l.b16 %v1055
        %v1152 = vunpack.c.h.b16 %v1055
        %v1153 = vunpack.c.l.b16 %v1056
        %v1154 = vunpack.c.h.b16 %v1056
        %v1155 = vunpack.c.l.b16 %v1057
        %v1156 = vunpack.c.h.b16 %v1057
        %v1157 = vunpack.c.l.b16 %v1058
        %v1158 = vunpack.c.h.b16 %v1058
        %v1159 = vunpack.c.l.b16 %v1059
        %v1160 = vunpack.c.h.b16 %v1059
        %v1161 = vunpack.c.l.b16 %v1060
        %v1162 = vunpack.c.h.b16 %v1060
        %v1163 = vunpack.c.l.b16 %v1061
        %v1164 = vunpack.c.h.b16 %v1061
        %v1165 = vunpack.c.l.b16 %v1062
        %v1166 = vunpack.c.h.b16 %v1062
        %v1167 = vunpack.c.l.b16 %v1063
        %v1168 = vunpack.c.h.b16 %v1063
        %v1169 = vunpack.c.l.b16 %v1064
        %v1170 = vunpack.c.h.b16 %v1064
        %v1171 = vunpack.c.l.b16 %v1065
        %v1172 = vunpack.c.h.b16 %v1065
        %v1173 = vunpack.c.l.b16 %v1066
        %v1174 = vunpack.c.h.b16 %v1066
        %v1175 = vunpack.c.l.b16 %v1067
        %v1176 = vunpack.c.h.b16 %v1067
        %v1177 = vunpack.c.l.b16 %v1068
        %v1178 = vunpack.c.h.b16 %v1068
        %v1179 = vunpack.c.l.b16 %v1069
        %v1180 = vunpack.c.h.b16 %v1069
        %v1181 = vunpack.c.l.b16 %v1070
        %v1182 = vunpack.c.h.b16 %v1070
        %v1183 = vpack.c.b16 %v1121, %v1119
        %v1184 = vpack.c.b16 %v1122, %v1120
        %v1185 = vpack.c.b16 %v1125, %v1123
        %v1186 = vpack.c.b16 %v1126, %v1124
        %v1187 = vpack.c.b16 %v1129, %v1127
        %v1188 = vpack.c.b16 %v1130, %v1128
        %v1189 = vpack.c.b16 %v1133, %v1131
        %v1190 = vpack.c.b16 %v1134, %v1132
        %v1191 = vpack.c.b16 %v1137, %v1135
        %v1192 = vpack.c.b16 %v1138, %v1136
        %v1193 = vpack.c.b16 %v1141, %v1139
        %v1194 = vpack.c.b16 %v1142, %v1140
        %v1195 = vpack.c.b16 %v1145, %v1143
        %v1196 = vpack.c.b16 %v1146, %v1144
        %v1197 = vpack.c.b16 %v1149, %v1147
        %v1198 = vpack.c.b16 %v1150, %v1148
        %v1199 = vpack.c.b16 %v1153, %v1151
        %v1200 = vpack.c.b16 %v1154, %v1152
        %v1201 = vpack.c.b16 %v1157, %v1155
        %v1202 = vpack.c.b16 %v1158, %v1156
        %v1203 = vpack.c.b16 %v1161, %v1159
        %v1204 = vpack.c.b16 %v1162, %v1160
        %v1205 = vpack.c.b16 %v1165, %v1163
        %v1206 = vpack.c.b16 %v1166, %v1164
        %v1207 = vpack.c.b16 %v1169, %v1167
        %v1208 = vpack.c.b16 %v1170, %v1168
        %v1209 = vpack.c.b16 %v1173, %v1171
        %v1210 = vpack.c.b16 %v1174, %v1172
        %v1211 = vpack.c.b16 %v1177, %v1175
        %v1212 = vpack.c.b16 %v1178, %v1176
        %v1213 = vpack.c.b16 %v1181, %v1179
        %v1214 = vpack.c.b16 %v1182, %v1180
        %1247 = vmatprep.subr.bf16.mxu0 %v1198
        %1248 = vmatpush1.bf16.msra.mxu0 %v1197
        %1249 = vmatprep.subr.bf16.mxu0 %v1196
        %1250 = vmatpush1.bf16.msra.mxu0 %v1195
        %1251 = vmatprep.subr.bf16.mxu0 %v1194
        %1252 = vmatpush1.bf16.msra.mxu0 %v1193
        %1253 = vmatprep.subr.bf16.mxu0 %v1192
        %1254 = vmatpush1.bf16.msra.mxu0 %v1191
        %1255 = vmatprep.subr.bf16.mxu0 %v1190
        %1256 = vmatpush1.bf16.msra.mxu0 %v1189
        %1257 = vmatprep.subr.bf16.mxu0 %v1188
        %1258 = vmatpush1.bf16.msra.mxu0 %v1187
        %1259 = vmatprep.subr.bf16.mxu0 %v1186
        %1260 = vmatpush1.bf16.msra.mxu0 %v1185
        %1261 = vmatprep.subr.bf16.mxu0 %v1184
        %1262 = vmatpush1.bf16.msra.mxu0 %v1183
        %1263 = vmatprep.subr.bf16.mxu0 %v1214
        %1264 = vmatpush2.bf16.msra.mxu0 %v1213
        %1265 = vmatprep.subr.bf16.mxu0 %v1212
        %1266 = vmatpush2.bf16.msra.mxu0 %v1211
        %1267 = vmatprep.subr.bf16.mxu0 %v1210
        %1268 = vmatpush2.bf16.msra.mxu0 %v1209
        %1269 = vmatprep.subr.bf16.mxu0 %v1208
        %1270 = vmatpush2.bf16.msra.mxu0 %v1207
        %1271 = vmatprep.subr.bf16.mxu0 %v1206
        %1272 = vmatpush2.bf16.msra.mxu0 %v1205
        %1273 = vmatprep.subr.bf16.mxu0 %v1204
        %1274 = vmatpush2.bf16.msra.mxu0 %v1203
        %1275 = vmatprep.subr.bf16.mxu0 %v1202
        %1276 = vmatpush2.bf16.msra.mxu0 %v1201
        %1277 = vmatprep.subr.bf16.mxu0 %v1200
        %1278 = vmatpush2.bf16.msra.mxu0 %v1199
        %1279 = vmatprep.mubr.bf16.mxu0 %v1084
        %1280 = vmatmul.mubr.bf16.gmra.mxu0 %v1077
        %v1281 = vpop.f32.mrf.mxu0
        %v1282 = vadd.f32 0.0, %v1281
        %v1283 = vpop.f32.mrf.mxu0
        %v1284 = vadd.f32 0.0, %v1283
        %v1285 = vpop.f32.mrf.mxu0
        %v1286 = vpop.f32.mrf.mxu0
        %1287 = vdwg.mxu0
        %v1320 = vunpack.c.l.b16 %v1001
        %v1321 = vunpack.c.h.b16 %v1001
        %v1322 = vunpack.c.l.b16 %v1002
        %v1323 = vunpack.c.h.b16 %v1002
        %v1324 = vunpack.c.l.b16 %v1003
        %v1325 = vunpack.c.h.b16 %v1003
        %v1326 = vunpack.c.l.b16 %v1004
        %v1327 = vunpack.c.h.b16 %v1004
        %v1328 = vunpack.c.l.b16 %v1005
        %v1329 = vunpack.c.h.b16 %v1005
        %v1330 = vunpack.c.l.b16 %v1006
        %v1331 = vunpack.c.h.b16 %v1006
        %v1332 = vunpack.c.l.b16 %v1007
        %v1333 = vunpack.c.h.b16 %v1007
        %v1334 = vunpack.c.l.b16 %v1008
        %v1335 = vunpack.c.h.b16 %v1008
        %v1336 = vunpack.c.l.b16 %v1009
        %v1337 = vunpack.c.h.b16 %v1009
        %v1338 = vunpack.c.l.b16 %v1010
        %v1339 = vunpack.c.h.b16 %v1010
        %v1340 = vunpack.c.l.b16 %v1011
        %v1341 = vunpack.c.h.b16 %v1011
        %v1342 = vunpack.c.l.b16 %v1012
        %v1343 = vunpack.c.h.b16 %v1012
        %v1344 = vunpack.c.l.b16 %v1013
        %v1345 = vunpack.c.h.b16 %v1013
        %v1346 = vunpack.c.l.b16 %v1014
        %v1347 = vunpack.c.h.b16 %v1014
        %v1348 = vunpack.c.l.b16 %v1015
        %v1349 = vunpack.c.h.b16 %v1015
        %v1350 = vunpack.c.l.b16 %v1016
        %v1351 = vunpack.c.h.b16 %v1016
        %v1352 = vunpack.c.l.b16 %v1017
        %v1353 = vunpack.c.h.b16 %v1017
        %v1354 = vunpack.c.l.b16 %v1018
        %v1355 = vunpack.c.h.b16 %v1018
        %v1356 = vunpack.c.l.b16 %v1019
        %v1357 = vunpack.c.h.b16 %v1019
        %v1358 = vunpack.c.l.b16 %v1020
        %v1359 = vunpack.c.h.b16 %v1020
        %v1360 = vunpack.c.l.b16 %v1021
        %v1361 = vunpack.c.h.b16 %v1021
        %v1362 = vunpack.c.l.b16 %v1022
        %v1363 = vunpack.c.h.b16 %v1022
        %v1364 = vunpack.c.l.b16 %v1023
        %v1365 = vunpack.c.h.b16 %v1023
        %v1366 = vunpack.c.l.b16 %v1024
        %v1367 = vunpack.c.h.b16 %v1024
        %v1368 = vunpack.c.l.b16 %v1025
        %v1369 = vunpack.c.h.b16 %v1025
        %v1370 = vunpack.c.l.b16 %v1026
        %v1371 = vunpack.c.h.b16 %v1026
        %v1372 = vunpack.c.l.b16 %v1027
        %v1373 = vunpack.c.h.b16 %v1027
        %v1374 = vunpack.c.l.b16 %v1028
        %v1375 = vunpack.c.h.b16 %v1028
        %v1376 = vunpack.c.l.b16 %v1029
        %v1377 = vunpack.c.h.b16 %v1029
        %v1378 = vunpack.c.l.b16 %v1030
        %v1379 = vunpack.c.h.b16 %v1030
        %v1380 = vunpack.c.l.b16 %v1031
        %v1381 = vunpack.c.h.b16 %v1031
        %v1382 = vunpack.c.l.b16 %v1032
        %v1383 = vunpack.c.h.b16 %v1032
        %v1384 = vpack.c.b16 %v1322, %v1320
        %v1385 = vpack.c.b16 %v1323, %v1321
        %v1386 = vpack.c.b16 %v1326, %v1324
        %v1387 = vpack.c.b16 %v1327, %v1325
        %v1388 = vpack.c.b16 %v1330, %v1328
        %v1389 = vpack.c.b16 %v1331, %v1329
        %v1390 = vpack.c.b16 %v1334, %v1332
        %v1391 = vpack.c.b16 %v1335, %v1333
        %v1392 = vpack.c.b16 %v1338, %v1336
        %v1393 = vpack.c.b16 %v1339, %v1337
        %v1394 = vpack.c.b16 %v1342, %v1340
        %v1395 = vpack.c.b16 %v1343, %v1341
        %v1396 = vpack.c.b16 %v1346, %v1344
        %v1397 = vpack.c.b16 %v1347, %v1345
        %v1398 = vpack.c.b16 %v1350, %v1348
        %v1399 = vpack.c.b16 %v1351, %v1349
        %v1400 = vpack.c.b16 %v1354, %v1352
        %v1401 = vpack.c.b16 %v1355, %v1353
        %v1402 = vpack.c.b16 %v1358, %v1356
        %v1403 = vpack.c.b16 %v1359, %v1357
        %v1404 = vpack.c.b16 %v1362, %v1360
        %v1405 = vpack.c.b16 %v1363, %v1361
        %v1406 = vpack.c.b16 %v1366, %v1364
        %v1407 = vpack.c.b16 %v1367, %v1365
        %v1408 = vpack.c.b16 %v1370, %v1368
        %v1409 = vpack.c.b16 %v1371, %v1369
        %v1410 = vpack.c.b16 %v1374, %v1372
        %v1411 = vpack.c.b16 %v1375, %v1373
        %v1412 = vpack.c.b16 %v1378, %v1376
        %v1413 = vpack.c.b16 %v1379, %v1377
        %v1414 = vpack.c.b16 %v1382, %v1380
        %v1415 = vpack.c.b16 %v1383, %v1381
        %1448 = vmatprep.subr.bf16.mxu0 %v1399
        %1449 = vmatpush1.bf16.msra.mxu0 %v1398
        %1450 = vmatprep.subr.bf16.mxu0 %v1397
        %1451 = vmatpush1.bf16.msra.mxu0 %v1396
        %1452 = vmatprep.subr.bf16.mxu0 %v1395
        %1453 = vmatpush1.bf16.msra.mxu0 %v1394
        %1454 = vmatprep.subr.bf16.mxu0 %v1393
        %1455 = vmatpush1.bf16.msra.mxu0 %v1392
        %1456 = vmatprep.subr.bf16.mxu0 %v1391
        %1457 = vmatpush1.bf16.msra.mxu0 %v1390
        %1458 = vmatprep.subr.bf16.mxu0 %v1389
        %1459 = vmatpush1.bf16.msra.mxu0 %v1388
        %1460 = vmatprep.subr.bf16.mxu0 %v1387
        %1461 = vmatpush1.bf16.msra.mxu0 %v1386
        %1462 = vmatprep.subr.bf16.mxu0 %v1385
        %1463 = vmatpush1.bf16.msra.mxu0 %v1384
        %1464 = vmatprep.subr.bf16.mxu0 %v1415
        %1465 = vmatpush2.bf16.msra.mxu0 %v1414
        %1466 = vmatprep.subr.bf16.mxu0 %v1413
        %1467 = vmatpush2.bf16.msra.mxu0 %v1412
        %1468 = vmatprep.subr.bf16.mxu0 %v1411
        %1469 = vmatpush2.bf16.msra.mxu0 %v1410
        %1470 = vmatprep.subr.bf16.mxu0 %v1409
        %1471 = vmatpush2.bf16.msra.mxu0 %v1408
        %1472 = vmatprep.subr.bf16.mxu0 %v1407
        %1473 = vmatpush2.bf16.msra.mxu0 %v1406
        %1474 = vmatprep.subr.bf16.mxu0 %v1405
        %1475 = vmatpush2.bf16.msra.mxu0 %v1404
        %1476 = vmatprep.subr.bf16.mxu0 %v1403
        %1477 = vmatpush2.bf16.msra.mxu0 %v1402
        %1478 = vmatprep.subr.bf16.mxu0 %v1401
        %1479 = vmatpush2.bf16.msra.mxu0 %v1400
        %1480 = vmatprep.mubr.bf16.mxu0 %v1000
        %1481 = vmatmul.mubr.bf16.gmra.mxu0 %v999
        %v1482 = vpop.f32.mrf.mxu0
        %v1483 = vadd.f32 %v1282, %v1482
        %v1484 = vpop.f32.mrf.mxu0
        %v1485 = vadd.f32 %v1284, %v1484
        %v1486 = vpop.f32.mrf.mxu0
        %v1487 = vpop.f32.mrf.mxu0
        %1488 = vdwg.mxu0
        %v1489 = vld [vmem:[#allocation2] sm:$0xfc]
        %v1490 = vld [vmem:[#allocation2 + $0x8] sm:$0xfc]
        %v1491 = vld [vmem:[#allocation2 + $0x10] sm:$0x3]
        %v1492 = vld [vmem:[#allocation2 + $0x18] sm:$0x3]
        %v1493 = vpack.c.bf16 %v1491, %v1489
        %v1494 = vpack.c.bf16 %v1492, %v1490
        %v1495 = vld [vmem:[%s7] sm:$0xff]
        %v1496 = vld [vmem:[%s7 + $0x8] sm:$0xff]
        %v1497 = vld [vmem:[%s7 + $0x10] sm:$0xff]
        %v1498 = vld [vmem:[%s7 + $0x18] sm:$0xff]
        %v1499 = vld [vmem:[%s7 + $0x20] sm:$0xff]
        %v1500 = vld [vmem:[%s7 + $0x28] sm:$0xff]
        %v1501 = vld [vmem:[%s7 + $0x30] sm:$0xff]
        %v1502 = vld [vmem:[%s7 + $0x38] sm:$0xff]
        %v1503 = vld [vmem:[%s7 + $0x40] sm:$0xff]
        %v1504 = vld [vmem:[%s7 + $0x48] sm:$0xff]
        %v1505 = vld [vmem:[%s7 + $0x50] sm:$0xff]
        %v1506 = vld [vmem:[%s7 + $0x58] sm:$0xff]
        %v1507 = vld [vmem:[%s7 + $0x60] sm:$0xff]
        %v1508 = vld [vmem:[%s7 + $0x68] sm:$0xff]
        %v1509 = vld [vmem:[%s7 + $0x70] sm:$0xff]
        %v1510 = vld [vmem:[%s7 + $0x78] sm:$0xff]
        %v1511 = vld [vmem:[%s7 + $0x80] sm:$0xff]
        %v1512 = vld [vmem:[%s7 + $0x88] sm:$0xff]
        %v1513 = vld [vmem:[%s7 + $0x90] sm:$0xff]
        %v1514 = vld [vmem:[%s7 + $0x98] sm:$0xff]
        %v1515 = vld [vmem:[%s7 + $0xa0] sm:$0xff]
        %v1516 = vld [vmem:[%s7 + $0xa8] sm:$0xff]
        %v1517 = vld [vmem:[%s7 + $0xb0] sm:$0xff]
        %v1518 = vld [vmem:[%s7 + $0xb8] sm:$0xff]
        %v1519 = vld [vmem:[%s7 + $0xc0] sm:$0xff]
        %v1520 = vld [vmem:[%s7 + $0xc8] sm:$0xff]
        %v1521 = vld [vmem:[%s7 + $0xd0] sm:$0xff]
        %v1522 = vld [vmem:[%s7 + $0xd8] sm:$0xff]
        %v1523 = vld [vmem:[%s7 + $0xe0] sm:$0xff]
        %v1524 = vld [vmem:[%s7 + $0xe8] sm:$0xff]
        %v1525 = vld [vmem:[%s7 + $0xf0] sm:$0xff]
        %v1526 = vld [vmem:[%s7 + $0xf8] sm:$0xff]
        %v1529 = vrot.slane %v1493, 1
        %v1530 = vrot.slane %v1494, 1
        %v1565 = vunpack.c.l.b16 %v1495
        %v1566 = vunpack.c.h.b16 %v1495
        %v1567 = vunpack.c.l.b16 %v1496
        %v1568 = vunpack.c.h.b16 %v1496
        %v1569 = vunpack.c.l.b16 %v1497
        %v1570 = vunpack.c.h.b16 %v1497
        %v1571 = vunpack.c.l.b16 %v1498
        %v1572 = vunpack.c.h.b16 %v1498
        %v1573 = vunpack.c.l.b16 %v1499
        %v1574 = vunpack.c.h.b16 %v1499
        %v1575 = vunpack.c.l.b16 %v1500
        %v1576 = vunpack.c.h.b16 %v1500
        %v1577 = vunpack.c.l.b16 %v1501
        %v1578 = vunpack.c.h.b16 %v1501
        %v1579 = vunpack.c.l.b16 %v1502
        %v1580 = vunpack.c.h.b16 %v1502
        %v1581 = vunpack.c.l.b16 %v1503
        %v1582 = vunpack.c.h.b16 %v1503
        %v1583 = vunpack.c.l.b16 %v1504
        %v1584 = vunpack.c.h.b16 %v1504
        %v1585 = vunpack.c.l.b16 %v1505
        %v1586 = vunpack.c.h.b16 %v1505
        %v1587 = vunpack.c.l.b16 %v1506
        %v1588 = vunpack.c.h.b16 %v1506
        %v1589 = vunpack.c.l.b16 %v1507
        %v1590 = vunpack.c.h.b16 %v1507
        %v1591 = vunpack.c.l.b16 %v1508
        %v1592 = vunpack.c.h.b16 %v1508
        %v1593 = vunpack.c.l.b16 %v1509
        %v1594 = vunpack.c.h.b16 %v1509
        %v1595 = vunpack.c.l.b16 %v1510
        %v1596 = vunpack.c.h.b16 %v1510
        %v1597 = vunpack.c.l.b16 %v1511
        %v1598 = vunpack.c.h.b16 %v1511
        %v1599 = vunpack.c.l.b16 %v1512
        %v1600 = vunpack.c.h.b16 %v1512
        %v1601 = vunpack.c.l.b16 %v1513
        %v1602 = vunpack.c.h.b16 %v1513
        %v1603 = vunpack.c.l.b16 %v1514
        %v1604 = vunpack.c.h.b16 %v1514
        %v1605 = vunpack.c.l.b16 %v1515
        %v1606 = vunpack.c.h.b16 %v1515
        %v1607 = vunpack.c.l.b16 %v1516
        %v1608 = vunpack.c.h.b16 %v1516
        %v1609 = vunpack.c.l.b16 %v1517
        %v1610 = vunpack.c.h.b16 %v1517
        %v1611 = vunpack.c.l.b16 %v1518
        %v1612 = vunpack.c.h.b16 %v1518
        %v1613 = vunpack.c.l.b16 %v1519
        %v1614 = vunpack.c.h.b16 %v1519
        %v1615 = vunpack.c.l.b16 %v1520
        %v1616 = vunpack.c.h.b16 %v1520
        %v1617 = vunpack.c.l.b16 %v1521
        %v1618 = vunpack.c.h.b16 %v1521
        %v1619 = vunpack.c.l.b16 %v1522
        %v1620 = vunpack.c.h.b16 %v1522
        %v1621 = vunpack.c.l.b16 %v1523
        %v1622 = vunpack.c.h.b16 %v1523
        %v1623 = vunpack.c.l.b16 %v1524
        %v1624 = vunpack.c.h.b16 %v1524
        %v1625 = vunpack.c.l.b16 %v1525
        %v1626 = vunpack.c.h.b16 %v1525
        %v1627 = vunpack.c.l.b16 %v1526
        %v1628 = vunpack.c.h.b16 %v1526
        %v1629 = vpack.c.b16 %v1567, %v1565
        %v1630 = vpack.c.b16 %v1568, %v1566
        %v1631 = vpack.c.b16 %v1571, %v1569
        %v1632 = vpack.c.b16 %v1572, %v1570
        %v1633 = vpack.c.b16 %v1575, %v1573
        %v1634 = vpack.c.b16 %v1576, %v1574
        %v1635 = vpack.c.b16 %v1579, %v1577
        %v1636 = vpack.c.b16 %v1580, %v1578
        %v1637 = vpack.c.b16 %v1583, %v1581
        %v1638 = vpack.c.b16 %v1584, %v1582
        %v1639 = vpack.c.b16 %v1587, %v1585
        %v1640 = vpack.c.b16 %v1588, %v1586
        %v1641 = vpack.c.b16 %v1591, %v1589
        %v1642 = vpack.c.b16 %v1592, %v1590
        %v1643 = vpack.c.b16 %v1595, %v1593
        %v1644 = vpack.c.b16 %v1596, %v1594
        %v1645 = vpack.c.b16 %v1599, %v1597
        %v1646 = vpack.c.b16 %v1600, %v1598
        %v1647 = vpack.c.b16 %v1603, %v1601
        %v1648 = vpack.c.b16 %v1604, %v1602
        %v1649 = vpack.c.b16 %v1607, %v1605
        %v1650 = vpack.c.b16 %v1608, %v1606
        %v1651 = vpack.c.b16 %v1611, %v1609
        %v1652 = vpack.c.b16 %v1612, %v1610
        %v1653 = vpack.c.b16 %v1615, %v1613
        %v1654 = vpack.c.b16 %v1616, %v1614
        %v1655 = vpack.c.b16 %v1619, %v1617
        %v1656 = vpack.c.b16 %v1620, %v1618
        %v1657 = vpack.c.b16 %v1623, %v1621
        %v1658 = vpack.c.b16 %v1624, %v1622
        %v1659 = vpack.c.b16 %v1627, %v1625
        %v1660 = vpack.c.b16 %v1628, %v1626
        %1693 = vmatprep.subr.bf16.mxu0 %v1644
        %1694 = vmatpush1.bf16.msra.mxu0 %v1643
        %1695 = vmatprep.subr.bf16.mxu0 %v1642
        %1696 = vmatpush1.bf16.msra.mxu0 %v1641
        %1697 = vmatprep.subr.bf16.mxu0 %v1640
        %1698 = vmatpush1.bf16.msra.mxu0 %v1639
        %1699 = vmatprep.subr.bf16.mxu0 %v1638
        %1700 = vmatpush1.bf16.msra.mxu0 %v1637
        %1701 = vmatprep.subr.bf16.mxu0 %v1636
        %1702 = vmatpush1.bf16.msra.mxu0 %v1635
        %1703 = vmatprep.subr.bf16.mxu0 %v1634
        %1704 = vmatpush1.bf16.msra.mxu0 %v1633
        %1705 = vmatprep.subr.bf16.mxu0 %v1632
        %1706 = vmatpush1.bf16.msra.mxu0 %v1631
        %1707 = vmatprep.subr.bf16.mxu0 %v1630
        %1708 = vmatpush1.bf16.msra.mxu0 %v1629
        %1709 = vmatprep.subr.bf16.mxu0 %v1660
        %1710 = vmatpush2.bf16.msra.mxu0 %v1659
        %1711 = vmatprep.subr.bf16.mxu0 %v1658
        %1712 = vmatpush2.bf16.msra.mxu0 %v1657
        %1713 = vmatprep.subr.bf16.mxu0 %v1656
        %1714 = vmatpush2.bf16.msra.mxu0 %v1655
        %1715 = vmatprep.subr.bf16.mxu0 %v1654
        %1716 = vmatpush2.bf16.msra.mxu0 %v1653
        %1717 = vmatprep.subr.bf16.mxu0 %v1652
        %1718 = vmatpush2.bf16.msra.mxu0 %v1651
        %1719 = vmatprep.subr.bf16.mxu0 %v1650
        %1720 = vmatpush2.bf16.msra.mxu0 %v1649
        %1721 = vmatprep.subr.bf16.mxu0 %v1648
        %1722 = vmatpush2.bf16.msra.mxu0 %v1647
        %1723 = vmatprep.subr.bf16.mxu0 %v1646
        %1724 = vmatpush2.bf16.msra.mxu0 %v1645
        %1725 = vmatprep.mubr.bf16.mxu0 %v1530
        %1726 = vmatmul.mubr.bf16.gmra.mxu0 %v1529
        %v1727 = vpop.f32.mrf.mxu0
        %v1728 = vadd.f32 0.0, %v1727
        %v1729 = vpop.f32.mrf.mxu0
        %v1730 = vadd.f32 0.0, %v1729
        %v1731 = vpop.f32.mrf.mxu0
        %v1732 = vpop.f32.mrf.mxu0
        %1733 = vdwg.mxu0
        %v1734 = vadd.f32 %v1483, %v1728
        %v1735 = vadd.f32 %v1485, %v1730
        %v1736 = vld [vmem:[%s8] sm:$0x3]
        %v1738 = vlaneseq
        %v1739 = vshrl.u32 %v1738, 7
        %v1740 = vsub.s32 0, %v1739
        %v1741 = vrot.slane %v1736, %v1740
        %v1742 = vlaneseq
        %v1743 = vshrl.u32 %v1742, 7
        %v1744 = vsub.s32 1, %v1743
        %v1745 = vrot.slane %v1736, %v1744
        %v1748 = vadd.f32 %v1734, %v1741
        %v1749 = vadd.f32 %v1735, %v1745
        %v1750 = vmax.f32 %v1748, 0.0
        %v1751 = vmax.f32 %v1749, 0.0
        %v1752 = vpack.c.bf16 %v1750, %v1750
        %v1753 = vpack.c.bf16 %v1751, %v1751
        %v1754 = vld [vmem:[#allocation8] sm:$0xf]
        %v1755 = vld [vmem:[#allocation8 + $0x4] sm:$0xf]
        %v1756 = vld [vmem:[#allocation8 + $0x8] sm:$0xf]
        %v1757 = vld [vmem:[#allocation8 + $0xc] sm:$0xf]
        %v1758 = vld [vmem:[#allocation8 + $0x10] sm:$0xf]
        %v1759 = vld [vmem:[#allocation8 + $0x14] sm:$0xf]
        %v1760 = vld [vmem:[#allocation8 + $0x18] sm:$0xf]
        %v1761 = vld [vmem:[#allocation8 + $0x1c] sm:$0xf]
        %v1762 = vld [vmem:[#allocation8 + $0x20] sm:$0xf]
        %v1763 = vld [vmem:[#allocation8 + $0x24] sm:$0xf]
        %v1764 = vld [vmem:[#allocation8 + $0x28] sm:$0xf]
        %v1765 = vld [vmem:[#allocation8 + $0x2c] sm:$0xf]
        %v1766 = vld [vmem:[#allocation8 + $0x30] sm:$0xf]
        %v1767 = vld [vmem:[#allocation8 + $0x34] sm:$0xf]
        %v1768 = vld [vmem:[#allocation8 + $0x38] sm:$0xf]
        %v1769 = vld [vmem:[#allocation8 + $0x3c] sm:$0xf]
        %v1770 = vld [vmem:[#allocation8 + $0x40] sm:$0xf]
        %v1771 = vld [vmem:[#allocation8 + $0x44] sm:$0xf]
        %v1772 = vld [vmem:[#allocation8 + $0x48] sm:$0xf]
        %v1773 = vld [vmem:[#allocation8 + $0x4c] sm:$0xf]
        %v1774 = vld [vmem:[#allocation8 + $0x50] sm:$0xf]
        %v1775 = vld [vmem:[#allocation8 + $0x54] sm:$0xf]
        %v1776 = vld [vmem:[#allocation8 + $0x58] sm:$0xf]
        %v1777 = vld [vmem:[#allocation8 + $0x5c] sm:$0xf]
        %v1778 = vld [vmem:[#allocation8 + $0x60] sm:$0xf]
        %v1779 = vld [vmem:[#allocation8 + $0x64] sm:$0xf]
        %v1780 = vld [vmem:[#allocation8 + $0x68] sm:$0xf]
        %v1781 = vld [vmem:[#allocation8 + $0x6c] sm:$0xf]
        %v1782 = vld [vmem:[#allocation8 + $0x70] sm:$0xf]
        %v1783 = vld [vmem:[#allocation8 + $0x74] sm:$0xf]
        %v1784 = vld [vmem:[#allocation8 + $0x78] sm:$0xf]
        %v1785 = vld [vmem:[#allocation8 + $0x7c] sm:$0xf]
        %v1786 = vld [vmem:[%s10] sm:$0x1]
        %v1788 = vlaneseq
        %v1789 = vshrl.u32 %v1788, 7
        %v1790 = vsub.s32 0, %v1789
        %v1791 = vrot.slane %v1786, %v1790
        %v1825 = vunpack.c.l.b16 %v1754
        %v1826 = vunpack.c.l.b16 %v1755
        %v1827 = vunpack.c.l.b16 %v1756
        %v1828 = vunpack.c.l.b16 %v1757
        %v1829 = vunpack.c.l.b16 %v1758
        %v1830 = vunpack.c.l.b16 %v1759
        %v1831 = vunpack.c.l.b16 %v1760
        %v1832 = vunpack.c.l.b16 %v1761
        %v1833 = vunpack.c.l.b16 %v1762
        %v1834 = vunpack.c.l.b16 %v1763
        %v1835 = vunpack.c.l.b16 %v1764
        %v1836 = vunpack.c.l.b16 %v1765
        %v1837 = vunpack.c.l.b16 %v1766
        %v1838 = vunpack.c.l.b16 %v1767
        %v1839 = vunpack.c.l.b16 %v1768
        %v1840 = vunpack.c.l.b16 %v1769
        %v1841 = vunpack.c.l.b16 %v1770
        %v1842 = vunpack.c.l.b16 %v1771
        %v1843 = vunpack.c.l.b16 %v1772
        %v1844 = vunpack.c.l.b16 %v1773
        %v1845 = vunpack.c.l.b16 %v1774
        %v1846 = vunpack.c.l.b16 %v1775
        %v1847 = vunpack.c.l.b16 %v1776
        %v1848 = vunpack.c.l.b16 %v1777
        %v1849 = vunpack.c.l.b16 %v1778
        %v1850 = vunpack.c.l.b16 %v1779
        %v1851 = vunpack.c.l.b16 %v1780
        %v1852 = vunpack.c.l.b16 %v1781
        %v1853 = vunpack.c.l.b16 %v1782
        %v1854 = vunpack.c.l.b16 %v1783
        %v1855 = vunpack.c.l.b16 %v1784
        %v1856 = vunpack.c.l.b16 %v1785
        %v1857 = vpack.c.b16 %v1826, %v1825
        %v1858 = vpack.c.b16 %v1828, %v1827
        %v1859 = vpack.c.b16 %v1830, %v1829
        %v1860 = vpack.c.b16 %v1832, %v1831
        %v1861 = vpack.c.b16 %v1834, %v1833
        %v1862 = vpack.c.b16 %v1836, %v1835
        %v1863 = vpack.c.b16 %v1838, %v1837
        %v1864 = vpack.c.b16 %v1840, %v1839
        %v1865 = vpack.c.b16 %v1842, %v1841
        %v1866 = vpack.c.b16 %v1844, %v1843
        %v1867 = vpack.c.b16 %v1846, %v1845
        %v1868 = vpack.c.b16 %v1848, %v1847
        %v1869 = vpack.c.b16 %v1850, %v1849
        %v1870 = vpack.c.b16 %v1852, %v1851
        %v1871 = vpack.c.b16 %v1854, %v1853
        %v1872 = vpack.c.b16 %v1856, %v1855
        %1889 = vmatprep.subr.bf16.mxu0 0
        %1890 = vmatpush1.bf16.msra.mxu0 %v1864
        %1891 = vmatprep.subr.bf16.mxu0 0
        %1892 = vmatpush1.bf16.msra.mxu0 %v1863
        %1893 = vmatprep.subr.bf16.mxu0 0
        %1894 = vmatpush1.bf16.msra.mxu0 %v1862
        %1895 = vmatprep.subr.bf16.mxu0 0
        %1896 = vmatpush1.bf16.msra.mxu0 %v1861
        %1897 = vmatprep.subr.bf16.mxu0 0
        %1898 = vmatpush1.bf16.msra.mxu0 %v1860
        %1899 = vmatprep.subr.bf16.mxu0 0
        %1900 = vmatpush1.bf16.msra.mxu0 %v1859
        %1901 = vmatprep.subr.bf16.mxu0 0
        %1902 = vmatpush1.bf16.msra.mxu0 %v1858
        %1903 = vmatprep.subr.bf16.mxu0 0
        %1904 = vmatpush1.bf16.msra.mxu0 %v1857
        %1905 = vmatprep.subr.bf16.mxu0 0
        %1906 = vmatpush2.bf16.msra.mxu0 %v1872
        %1907 = vmatprep.subr.bf16.mxu0 0
        %1908 = vmatpush2.bf16.msra.mxu0 %v1871
        %1909 = vmatprep.subr.bf16.mxu0 0
        %1910 = vmatpush2.bf16.msra.mxu0 %v1870
        %1911 = vmatprep.subr.bf16.mxu0 0
        %1912 = vmatpush2.bf16.msra.mxu0 %v1869
        %1913 = vmatprep.subr.bf16.mxu0 0
        %1914 = vmatpush2.bf16.msra.mxu0 %v1868
        %1915 = vmatprep.subr.bf16.mxu0 0
        %1916 = vmatpush2.bf16.msra.mxu0 %v1867
        %1917 = vmatprep.subr.bf16.mxu0 0
        %1918 = vmatpush2.bf16.msra.mxu0 %v1866
        %1919 = vmatprep.subr.bf16.mxu0 0
        %1920 = vmatpush2.bf16.msra.mxu0 %v1865
        %1921 = vmatprep.mubr.bf16.mxu0 %v1753
        %1922 = vmatmul.mubr.bf16.gmra.mxu0 %v1752
        %v1923 = vpop.f32.mrf.mxu0
        %v1924 = vadd.f32 %v1791, %v1923
        %v1925 = vpop.f32.mrf.mxu0
        %v1926 = vpop.f32.mrf.mxu0
        %v1927 = vpop.f32.mrf.mxu0
        %1928 = vdwg.mxu0
        %1929 = vrot.lane.b32.xlu0 %v1924, 1
        %v1930 = vpop.permute.xlu0 %1929
        %v1931 = vmax.f32 %v1924, %v1930
        %1932 = vrot.lane.b32.xlu0 %v1931, 2
        %v1933 = vpop.permute.xlu0 %1932
        %v1934 = vmax.f32 %v1931, %v1933
        %v1935 = vld [vmem:[#allocation11] sm:$0xff]
        %v1936 = vld [vmem:[#allocation11 + $0x8] sm:$0xff]
        %v1937 = vld [vmem:[#allocation11 + $0x10] sm:$0xff]
        %v1938 = vld [vmem:[#allocation11 + $0x18] sm:$0xff]
        %v1939 = vld [vmem:[#allocation11 + $0x20] sm:$0xff]
        %v1940 = vld [vmem:[#allocation11 + $0x28] sm:$0xff]
        %v1941 = vld [vmem:[#allocation11 + $0x30] sm:$0xff]
        %v1942 = vld [vmem:[#allocation11 + $0x38] sm:$0xff]
        %v1943 = vld [vmem:[#allocation11 + $0x40] sm:$0xff]
        %v1944 = vld [vmem:[#allocation11 + $0x48] sm:$0xff]
        %v1945 = vld [vmem:[#allocation11 + $0x50] sm:$0xff]
        %v1946 = vld [vmem:[#allocation11 + $0x58] sm:$0xff]
        %v1947 = vld [vmem:[#allocation11 + $0x60] sm:$0xff]
        %v1948 = vld [vmem:[#allocation11 + $0x68] sm:$0xff]
        %v1949 = vld [vmem:[#allocation11 + $0x70] sm:$0xff]
        %v1950 = vld [vmem:[#allocation11 + $0x78] sm:$0xff]
        %1951 = vmatprep.subr.mxu0 0.0
        %1952 = vmatpush1.msra.mxu0 %v1950
        %1953 = vmatprep.subr.mxu0 0.0
        %1954 = vmatpush1.msra.mxu0 %v1949
        %1955 = vmatprep.subr.mxu0 0.0
        %1956 = vmatpush1.msra.mxu0 %v1948
        %1957 = vmatprep.subr.mxu0 0.0
        %1958 = vmatpush1.msra.mxu0 %v1947
        %1959 = vmatprep.subr.mxu0 0.0
        %1960 = vmatpush1.msra.mxu0 %v1946
        %1961 = vmatprep.subr.mxu0 0.0
        %1962 = vmatpush1.msra.mxu0 %v1945
        %1963 = vmatprep.subr.mxu0 0.0
        %1964 = vmatpush1.msra.mxu0 %v1944
        %1965 = vmatprep.subr.mxu0 0.0
        %1966 = vmatpush1.msra.mxu0 %v1943
        %1967 = vmatprep.subr.mxu0 0.0
        %1968 = vmatpush1.msra.mxu0 %v1942
        %1969 = vmatprep.subr.mxu0 0.0
        %1970 = vmatpush1.msra.mxu0 %v1941
        %1971 = vmatprep.subr.mxu0 0.0
        %1972 = vmatpush1.msra.mxu0 %v1940
        %1973 = vmatprep.subr.mxu0 0.0
        %1974 = vmatpush1.msra.mxu0 %v1939
        %1975 = vmatprep.subr.mxu0 0.0
        %1976 = vmatpush1.msra.mxu0 %v1938
        %1977 = vmatprep.subr.mxu0 0.0
        %1978 = vmatpush1.msra.mxu0 %v1937
        %1979 = vmatprep.subr.mxu0 0.0
        %1980 = vmatpush1.msra.mxu0 %v1936
        %1981 = vmatprep.subr.mxu0 0.0
        %1982 = vmatpush1.msra.mxu0 %v1935
        %1983 = vmatprep.subr.mxu0 0.0
        %1984 = vmatpush2.msra.mxu0 0.0
        %1985 = vmatprep.subr.mxu0 0.0
        %1986 = vmatpush2.msra.mxu0 0.0
        %1987 = vmatprep.subr.mxu0 0.0
        %1988 = vmatpush2.msra.mxu0 0.0
        %1989 = vmatprep.subr.mxu0 0.0
        %1990 = vmatpush2.msra.mxu0 0.0
        %1991 = vmatprep.subr.mxu0 0.0
        %1992 = vmatpush2.msra.mxu0 0.0
        %1993 = vmatprep.subr.mxu0 0.0
        %1994 = vmatpush2.msra.mxu0 0.0
        %1995 = vmatprep.subr.mxu0 0.0
        %1996 = vmatpush2.msra.mxu0 0.0
        %1997 = vmatprep.subr.mxu0 0.0
        %1998 = vmatpush2.msra.mxu0 0.0
        %1999 = vmatprep.subr.mxu0 0.0
        %2000 = vmatpush2.msra.mxu0 0.0
        %2001 = vmatprep.subr.mxu0 0.0
        %2002 = vmatpush2.msra.mxu0 0.0
        %2003 = vmatprep.subr.mxu0 0.0
        %2004 = vmatpush2.msra.mxu0 0.0
        %2005 = vmatprep.subr.mxu0 0.0
        %2006 = vmatpush2.msra.mxu0 0.0
        %2007 = vmatprep.subr.mxu0 0.0
        %2008 = vmatpush2.msra.mxu0 0.0
        %2009 = vmatprep.subr.mxu0 0.0
        %2010 = vmatpush2.msra.mxu0 0.0
        %2011 = vmatprep.subr.mxu0 0.0
        %2012 = vmatpush2.msra.mxu0 0.0
        %2013 = vmatprep.subr.mxu0 0.0
        %2014 = vmatpush2.msra.mxu0 0.0
        %2015 = vmatprep.mubr.f32.mxu0 0.0
        %2016 = vmatmul.mubr.f32.gmra.mxu0 %v1934
        %v2017 = vpop.f32.mrf.mxu0
        %v2018 = vadd.f32 0.0, %v2017
        %v2019 = vpop.f32.mrf.mxu0
        %2020 = vdwg.mxu0
        %v2021 = vsub.f32 %v1924, %v2018
        %v2022 = vmul.f32 %v2021, 1.442695
        %v2023 = vpow.pop %v2022
        %v2024 = vld [vmem:[#allocation10] sm:$0xff]
        %v2025 = vld [vmem:[#allocation10 + $0x8] sm:$0xff]
        %v2026 = vld [vmem:[#allocation10 + $0x10] sm:$0xff]
        %v2027 = vld [vmem:[#allocation10 + $0x18] sm:$0xff]
        %v2028 = vld [vmem:[#allocation10 + $0x20] sm:$0xff]
        %v2029 = vld [vmem:[#allocation10 + $0x28] sm:$0xff]
        %v2030 = vld [vmem:[#allocation10 + $0x30] sm:$0xff]
        %v2031 = vld [vmem:[#allocation10 + $0x38] sm:$0xff]
        %v2032 = vld [vmem:[#allocation10 + $0x40] sm:$0xff]
        %v2033 = vld [vmem:[#allocation10 + $0x48] sm:$0xff]
        %v2034 = vld [vmem:[#allocation10 + $0x50] sm:$0xff]
        %v2035 = vld [vmem:[#allocation10 + $0x58] sm:$0xff]
        %v2036 = vld [vmem:[#allocation10 + $0x60] sm:$0xff]
        %v2037 = vld [vmem:[#allocation10 + $0x68] sm:$0xff]
        %v2038 = vld [vmem:[#allocation10 + $0x70] sm:$0xff]
        %v2039 = vld [vmem:[#allocation10 + $0x78] sm:$0xff]
        %2040 = vmatprep.subr.mxu0 0.0
        %2041 = vmatpush1.msra.mxu0 %v2039
        %2042 = vmatprep.subr.mxu0 0.0
        %2043 = vmatpush1.msra.mxu0 %v2038
        %2044 = vmatprep.subr.mxu0 0.0
        %2045 = vmatpush1.msra.mxu0 %v2037
        %2046 = vmatprep.subr.mxu0 0.0
        %2047 = vmatpush1.msra.mxu0 %v2036
        %2048 = vmatprep.subr.mxu0 0.0
        %2049 = vmatpush1.msra.mxu0 %v2035
        %2050 = vmatprep.subr.mxu0 0.0
        %2051 = vmatpush1.msra.mxu0 %v2034
        %2052 = vmatprep.subr.mxu0 0.0
        %2053 = vmatpush1.msra.mxu0 %v2033
        %2054 = vmatprep.subr.mxu0 0.0
        %2055 = vmatpush1.msra.mxu0 %v2032
        %2056 = vmatprep.subr.mxu0 0.0
        %2057 = vmatpush1.msra.mxu0 %v2031
        %2058 = vmatprep.subr.mxu0 0.0
        %2059 = vmatpush1.msra.mxu0 %v2030
        %2060 = vmatprep.subr.mxu0 0.0
        %2061 = vmatpush1.msra.mxu0 %v2029
        %2062 = vmatprep.subr.mxu0 0.0
        %2063 = vmatpush1.msra.mxu0 %v2028
        %2064 = vmatprep.subr.mxu0 0.0
        %2065 = vmatpush1.msra.mxu0 %v2027
        %2066 = vmatprep.subr.mxu0 0.0
        %2067 = vmatpush1.msra.mxu0 %v2026
        %2068 = vmatprep.subr.mxu0 0.0
        %2069 = vmatpush1.msra.mxu0 %v2025
        %2070 = vmatprep.subr.mxu0 0.0
        %2071 = vmatpush1.msra.mxu0 %v2024
        %2072 = vmatprep.subr.mxu0 0.0
        %2073 = vmatpush2.msra.mxu0 0.0
        %2074 = vmatprep.subr.mxu0 0.0
        %2075 = vmatpush2.msra.mxu0 0.0
        %2076 = vmatprep.subr.mxu0 0.0
        %2077 = vmatpush2.msra.mxu0 0.0
        %2078 = vmatprep.subr.mxu0 0.0
        %2079 = vmatpush2.msra.mxu0 0.0
        %2080 = vmatprep.subr.mxu0 0.0
        %2081 = vmatpush2.msra.mxu0 0.0
        %2082 = vmatprep.subr.mxu0 0.0
        %2083 = vmatpush2.msra.mxu0 0.0
        %2084 = vmatprep.subr.mxu0 0.0
        %2085 = vmatpush2.msra.mxu0 0.0
        %2086 = vmatprep.subr.mxu0 0.0
        %2087 = vmatpush2.msra.mxu0 0.0
        %2088 = vmatprep.subr.mxu0 0.0
        %2089 = vmatpush2.msra.mxu0 0.0
        %2090 = vmatprep.subr.mxu0 0.0
        %2091 = vmatpush2.msra.mxu0 0.0
        %2092 = vmatprep.subr.mxu0 0.0
        %2093 = vmatpush2.msra.mxu0 0.0
        %2094 = vmatprep.subr.mxu0 0.0
        %2095 = vmatpush2.msra.mxu0 0.0
        %2096 = vmatprep.subr.mxu0 0.0
        %2097 = vmatpush2.msra.mxu0 0.0
        %2098 = vmatprep.subr.mxu0 0.0
        %2099 = vmatpush2.msra.mxu0 0.0
        %2100 = vmatprep.subr.mxu0 0.0
        %2101 = vmatpush2.msra.mxu0 0.0
        %2102 = vmatprep.subr.mxu0 0.0
        %2103 = vmatpush2.msra.mxu0 0.0
        %2104 = vmatprep.mubr.f32.mxu0 0.0
        %2105 = vmatmul.mubr.f32.gmra.mxu0 %v2023
        %v2106 = vpop.f32.mrf.mxu0
        %v2107 = vadd.f32 0.0, %v2106
        %v2108 = vpop.f32.mrf.mxu0
        %2109 = vdwg.mxu0
        %v2110 = vrcp.pop %v2107
        %v2111 = vmul.f32 %v2023, %v2110
        %2112 = vst [vmem:[%s526] sm:$0xff] %v2111
        %p2113 = scmp.lt.s32.totalorder %s28, 1
        %s2114 = scalar_select %p2113, %s28, 1
        %s2115 = smul.addr %s2114, 8
        %s2116 = scalar_lea.vmem %s13, %s2115
        // Predicated region
        $region97: #{last2d_forward.1} parent=71 // pred_check
          %p2117 = pneg %p324
        $region98: #{last2d_forward.1} parent=71 // pred_check_branch
          %2119 = sbr.rel (%p2117) target = $region100
        $region99: #{last2d_forward.1} parent=71 // pred_region
          _
        $region100: #{last2d_forward.1} parent=71 // pred_fallthru
          _
      $region72: #{last2d_forward.1} parent=5 // pred_fallthru
        _
      %p2120 = scmp.le.s32.totalorder 2, %s23
      // Predicated region
      $region101: #{last2d_forward.1} parent=5 // pred_check
        %p2121 = pneg %p2120
      $region102: #{last2d_forward.1} parent=5 // pred_check_branch
        %2123 = sbr.rel (%p2121) target = $region104
      $region103: #{last2d_forward.1} parent=5 // pred_region
        %s2124 = ssub.s32 %s23, 2
        // Predicated region
        $region105: #{last2d_forward.1} parent=103 // pred_check
          %p2125 = pneg %p330
        $region106: #{last2d_forward.1} parent=103 // pred_check_branch
          %2127 = sbr.rel (%p2125) target = $region108
        $region107: #{last2d_forward.1} parent=103 // pred_region
          %p2128 = scmp.lt.s32.totalorder %s29, 1
          %s2129 = scalar_select %p2128, %s29, 1
          %s2130 = smul.addr %s2129, 8
          %s2131 = scalar_lea.vmem %s13, %s2130
        $region108: #{last2d_forward.1} parent=103 // pred_fallthru
          _
      $region104: #{last2d_forward.1} parent=5 // pred_fallthru
        _
    $region6: #{last2d_forward.1} parent=1 // loop_footer
      %s27 = sadd.s32 1, %s23
    $region7: #{last2d_forward.1} parent=1 // loop_footer_branch
      %22 = sbr.rel target = $region3
    $region8: #{last2d_forward.1} parent=1 // loop_exit
      _
    %2132 = vsyncpa [#allocation4], 1
    %s2133 = scalar_lea.sflag [#allocation4], 1
    %2134 = vsyncpa %s2133, 1
    %2135 = vsyncpa [#allocation6], 1
    %2136 = vsyncpa [#allocation9], 1
    %2137 = vsyncpa [#allocation12], 1

</llo_original>
